<compile_context>
chip_gen: v7x
topology: tpu7x:2x2x1
jax: 0.10.0
libtpu: 0.0.40
codegen_flags: <defaults>
</compile_context>

<pallas_src>
import numpy as np
from concurrent.futures import ThreadPoolExecutor

import jax
import jax.numpy as jnp
from jax.experimental import pallas as pl
from jax.experimental.pallas import tpu as pltpu

try:  # preferred host matcher; pure-Python fallback below if missing
    from scipy.optimize import linear_sum_assignment as _scipy_lsa
except Exception:  # pragma: no cover
    _scipy_lsa = None

_EPS = 1e-8
_CHUNK = 128      # sublane chunk for the inner cost loop
_MAX_TQ = 512     # Q rows handled per grid step


def _round_up(x, m):
    return ((x + m - 1) // m) * m


# ---------------------------------------------------------------------------
# Pallas kernel 1: pairwise matching cost, gridded over (batch, Q-tiles)
# ---------------------------------------------------------------------------
def _cost_kernel(pred_ref, tgt_ref, cost_ref):
    """cost[q, n] = -cls[q] - GIoU(pred q, tgt n) + L1_xywh(pred q, tgt n).

    pred_ref: (TQ, 8) f32  rows [x, y, w, h, cls, 0, 0, 0]  (Q on sublanes)
    tgt_ref:  (4, N)  f32  coordinate-major targets          (N on lanes)
    cost_ref: (TQ, N) bf16 matching cost                     (N lane-dense)
    """
    tq = cost_ref.shape[0]

    t = tgt_ref[...]                       # (4, N): loaded once per grid step
    tx, ty = t[0:1, :], t[1:2, :]          # (1, N) lane rows
    tw, th = t[2:3, :], t[3:4, :]
    tx2, ty2 = tx + tw, ty + th
    t_area = tw * th

    # Inner loop over 128-row (sublane) chunks: bounds live ranges to one
    # (CHUNK, N) working set per iteration instead of the whole (TQ, N) slab.
    @pl.loop(0, tq // _CHUNK)
    def _(c):
        q0 = pl.multiple_of(c * _CHUNK, _CHUNK)
        pred = pred_ref[pl.ds(q0, _CHUNK), :]          # (CHUNK, 8)
        px, py = pred[:, 0:1], pred[:, 1:2]            # (CHUNK, 1) columns
        pw, ph = pred[:, 2:3], pred[:, 3:4]
        pcl = pred[:, 4:5]
        px2, py2 = px + pw, py + ph
        p_area = pw * ph

        # Intersection extents (CHUNK, N).
        d_x = jnp.minimum(px2, tx2) - jnp.maximum(px, tx)
        d_y = jnp.minimum(py2, ty2) - jnp.maximum(py, ty)
        iw = jnp.maximum(d_x, 0.0)
        ih = jnp.maximum(d_y, 0.0)
        inter = iw * ih
        union = (p_area + t_area) - inter
        # Enclosing box via max(a2,b2) - min(a1,b1) = w_a + w_b - overlap:
        # removes the duplicated min/max pair (and its re-broadcasts) per axis.
        ew = jnp.maximum((pw + tw) - d_x, 0.0)
        eh = jnp.maximum((ph + th) - d_y, 0.0)
        enclose = ew * eh

        # Ranking-only quantity (feeds Hungarian) -> EUP approx reciprocals,
        # VALU slots stay free; eps guards degenerate boxes.
        inv_u = pl.reciprocal(union + _EPS, approx=True)
        inv_e = pl.reciprocal(enclose + _EPS, approx=True)

        l1 = (jnp.abs(px - tx) + jnp.abs(py - ty)
              + jnp.abs(pw - tw) + jnp.abs(ph - th))
        # cost = l1 - cls - giou, with the giou negation folded into the order.
        cost = (l1 - pcl) + (enclose - union) * inv_e - inter * inv_u
        cost_ref[pl.ds(q0, _CHUNK), :] = cost.astype(cost_ref.dtype)


@jax.jit
def compute_cost_matrices(pred_boxes, pred_classes, targets):
    """Matching cost, lane-dense on N: shape (B, Qp, N), bf16 (Qp = padded Q)."""
    B, Q, _ = pred_boxes.shape
    N = targets.shape[1]

    tq = _MAX_TQ
    qp = _round_up(Q, _CHUNK)
    if qp <= tq:
        tq = qp
    else:
        qp = _round_up(qp, tq)

    pb = pred_boxes.astype(jnp.float32)
    pc = pred_classes.astype(jnp.float32)
    # One packed slab [x, y, w, h, cls, 0, 0, 0] -> single input DMA stream.
    slab = jnp.concatenate([pb, pc[:, :, None],
                            jnp.zeros((B, Q, 3), jnp.float32)], axis=2)
    slab = jnp.pad(slab, ((0, 0), (0, qp - Q), (0, 0)))             # (B, Qp, 8)
    tgtT = jnp.transpose(targets.astype(jnp.float32), (0, 2, 1))    # (B, 4, N)

    return pl.pallas_call(
        _cost_kernel,
        out_shape=jax.ShapeDtypeStruct((B, qp, N), jnp.bfloat16),
        grid=(B, qp // tq),
        in_specs=[pl.BlockSpec((None, tq, 8), lambda b, q: (b, q, 0)),
                  pl.BlockSpec((None, 4, N), lambda b, q: (b, 0, 0))],
        out_specs=pl.BlockSpec((None, tq, N), lambda b, q: (b, q, 0)),
        compiler_params=pltpu.CompilerParams(
            dimension_semantics=("parallel", "parallel")),
    )(slab, tgtT)


# ---------------------------------------------------------------------------
# Pallas kernel 2: fused scalar losses (mean BCE + matched-box L1 / GIoU)
# ---------------------------------------------------------------------------
def _fused_loss_kernel(p_ref, t_ref, src_ref, tgt_ref, scal_ref, out_ref):
    inv_m = scal_ref[0]        # 1 / (B*Q)   (real element count, not padded)
    inv_nb = scal_ref[1]       # 1 / num_boxes

    # ---- mean binary cross entropy (padded tail has p = t = 1 -> exactly 0) ----
    p = p_ref[...]                                     # (B, Qp)
    t = t_ref[...]
    log_p = jnp.maximum(jnp.log(p), -100.0)            # torch clamps log at -100
    log_1mp = jnp.maximum(jnp.log(1.0 - p), -100.0)
    bce = -(t * log_p + (1.0 - t) * log_1mp)
    out_ref[0, 0] = jnp.sum(bce) * inv_m

    # ---- matched-box losses, coordinate-major (4, K) lane rows ----
    s = src_ref[...]                                   # (4, K) pred xywh
    g = tgt_ref[...]                                   # (4, K) tgt  xywh
    out_ref[0, 1] = jnp.sum(jnp.abs(s - g)) * inv_nb   # loss_bbox

    sx1, sy1 = s[0:1, :], s[1:2, :]
    sx2, sy2 = sx1 + s[2:3, :], sy1 + s[3:4, :]
    gx1, gy1 = g[0:1, :], g[1:2, :]
    gx2, gy2 = gx1 + g[2:3, :], gy1 + g[3:4, :]
    s_area = (sx2 - sx1) * (sy2 - sy1)
    g_area = (gx2 - gx1) * (gy2 - gy1)
    iw = jnp.maximum(jnp.minimum(sx2, gx2) - jnp.maximum(sx1, gx1), 0.0)
    ih = jnp.maximum(jnp.minimum(sy2, gy2) - jnp.maximum(sy1, gy1), 0.0)
    inter = iw * ih
    union = s_area + g_area - inter
    iou = inter / (union + _EPS)                       # reported loss: exact div
    ew = jnp.maximum(jnp.maximum(sx2, gx2) - jnp.minimum(sx1, gx1), 0.0)
    eh = jnp.maximum(jnp.maximum(sy2, gy2) - jnp.minimum(sy1, gy1), 0.0)
    enclose = ew * eh
    giou = iou - (enclose - union) / (enclose + _EPS)
    out_ref[0, 2] = jnp.sum(1.0 - giou) * inv_nb       # loss_giou
    out_ref[0, 3] = jnp.float32(0.0)


@jax.jit
def _post_match_losses(pred_boxes, pred_classes, targets, idx_arr, scalars):
    """Label scatter + matched-box gather + fused-loss pallas_call (one jit)."""
    B, Q, _ = pred_boxes.shape
    N = targets.shape[1]

    batch_ix = jnp.arange(B, dtype=jnp.int32)[:, None]
    labels = jnp.zeros((B, Q), jnp.float32).at[batch_ix, idx_arr].set(1.0)

    src = jnp.take_along_axis(pred_boxes.astype(jnp.float32),
                              idx_arr[..., None], axis=1)           # (B, N, 4)
    srcT = src.reshape(B * N, 4).T                                  # (4, K)
    tgtT = targets.astype(jnp.float32).reshape(B * N, 4).T          # (4, K)

    qp = _round_up(Q, 128)                      # lane-dense, one pad only
    pad = ((0, 0), (0, qp - Q))
    p = jnp.pad(pred_classes.astype(jnp.float32), pad, constant_values=1.0)
    t = jnp.pad(labels, pad, constant_values=1.0)

    return pl.pallas_call(
        _fused_loss_kernel,
        out_shape=jax.ShapeDtypeStruct((1, 4), jnp.float32),
        in_specs=[pl.BlockSpec(memory_space=pltpu.MemorySpace.VMEM)] * 4
                 + [pl.BlockSpec(memory_space=pltpu.MemorySpace.SMEM)],
        out_specs=pl.BlockSpec(memory_space=pltpu.MemorySpace.SMEM),
    )(p, t, srcT, tgtT, scalars)


# ---------------------------------------------------------------------------
# Host-side Hungarian matching (fallback if scipy is unavailable)
# ---------------------------------------------------------------------------
def _hungarian_square(cost):
    """O(n^3) Hungarian algorithm on a square cost matrix. Returns col->row."""
    n = cost.shape[0]
    INF = np.inf
    u = np.zeros(n + 1)
    v = np.zeros(n + 1)
    p = np.zeros(n + 1, dtype=np.int64)
    way = np.zeros(n + 1, dtype=np.int64)
    for i in range(1, n + 1):
        p[0] = i
        j0 = 0
        minv = np.full(n + 1, INF)
        used = np.zeros(n + 1, dtype=bool)
        while True:
            used[j0] = True
            i0 = p[j0]
            delta = INF
            j1 = 0
            for j in range(1, n + 1):
                if not used[j]:
                    cur = cost[i0 - 1, j - 1] - u[i0] - v[j]
                    if cur < minv[j]:
                        minv[j] = cur
                        way[j] = j0
                    if minv[j] < delta:
                        delta = minv[j]
                        j1 = j
            for j in range(n + 1):
                if used[j]:
                    u[p[j]] += delta
                    v[j] -= delta
                else:
                    minv[j] -= delta
            j0 = j1
            if p[j0] == 0:
                break
        while True:
            j1 = way[j0]
            p[j0] = p[j1]
            j0 = j1
            if j0 == 0:
                break
    return p[1:] - 1   # column j -> assigned row


def linear_sum_assignment_rows(cost):
    """Reproduces scipy.optimize.linear_sum_assignment(cost)[0] (sorted rows)."""
    cost = np.asarray(cost, dtype=np.float64)
    n_rows, n_cols = cost.shape
    assert n_rows >= n_cols, "expected at least as many predictions as targets"
    padded = np.zeros((n_rows, n_rows), dtype=np.float64)   # dummy cols cost 0
    padded[:, :n_cols] = cost
    col_to_row = _hungarian_square(padded)
    rows = np.sort(col_to_row[:n_cols])
    return rows.astype(np.int32)


# ---------------------------------------------------------------------------
# DetectionCriterion (forward-only port)
# ---------------------------------------------------------------------------
class DetectionCriterion:
    def __init__(self, losses):
        self.losses = losses

    def _get_idx(self, outputs, targets):
        Q = outputs['pred_boxes'].shape[1]
        costs = compute_cost_matrices(outputs['pred_boxes'],
                                      outputs['pred_classes'],
                                      targets)
        # Kick off the bf16 device->host transfer asynchronously.
        try:
            costs.copy_to_host_async()
        except Exception:
            pass
        costs_np = np.asarray(costs).astype(np.float32)[:, :Q, :]   # drop Q pad
        B = costs_np.shape[0]

        def _solve(b):
            cost_qn = costs_np[b]                      # (Q, N), no transpose needed
            if _scipy_lsa is not None:
                return np.asarray(_scipy_lsa(cost_qn)[0], dtype=np.int32)
            return linear_sum_assignment_rows(cost_qn)

        # TODO(synk): combinatorial Hungarian matching has no Pallas equivalent;
        # it runs on the host (like the reference's `.detach().cpu()` call),
        # parallelized across images with a thread pool.
        with ThreadPoolExecutor(max_workers=min(8, B)) as ex:
            return list(ex.map(_solve, range(B)))

    def __call__(self, outputs, targets):
        pred_boxes = outputs['pred_boxes']       # (B, Q, 4)
        pred_classes = outputs['pred_classes']   # (B, Q)
        B, Q, _ = pred_boxes.shape

        boxes_idx = self._get_idx(outputs, targets)
        num_boxes = float(sum(t.shape[0] for t in targets))

        # Matched rows (sorted, like linear_sum_assignment(cost)[0]) paired with
        # targets in original order -- same (bug-compatible) pairing as the
        # PyTorch reference.
        idx_arr = jnp.asarray(np.stack(boxes_idx).astype(np.int32))   # (B, N)

        # 1/M and 1/num_boxes travel as data (SMEM input) -> no kernel retrace
        # when the target count changes between steps.
        inv_nb = (1.0 / num_boxes) if num_boxes > 0 else 0.0
        scalars = jnp.asarray([1.0 / float(B * Q), inv_nb], dtype=jnp.float32)

        fused = _post_match_losses(pred_boxes, pred_classes, targets,
                                   idx_arr, scalars)

        losses = {}
        for loss in self.losses:
            assert loss in ('classification', 'boxes'), \
                f'do you really want to compute {loss} loss?'
            if loss == 'classification':
                losses['loss_classification'] = fused[0, 0]
            else:
                losses['loss_bbox'] = fused[0, 1]
                losses['loss_giou'] = fused[0, 2]
        return losses


# ---------------------------------------------------------------------------
if __name__ == "__main__":
    key = jax.random.PRNGKey(0)
    B, Q, N = 2, 16, 8   # batch, num predicted boxes, num target boxes

    k1, k2, k3, k4, k5 = jax.random.split(key, 5)
    pred_xy = jax.random.uniform(k1, (B, Q, 2), minval=0.0, maxval=1.0)
    pred_wh = jax.random.uniform(k2, (B, Q, 2), minval=0.05, maxval=0.5)
    pred_boxes = jnp.concatenate([pred_xy, pred_wh], axis=-1).astype(jnp.float32)
    pred_classes = jax.nn.sigmoid(jax.random.normal(k3, (B, Q))).astype(jnp.float32)

    tgt_xy = jax.random.uniform(k4, (B, N, 2), minval=0.0, maxval=1.0)
    tgt_wh = jax.random.uniform(k5, (B, N, 2), minval=0.05, maxval=0.5)
    targets = jnp.concatenate([tgt_xy, tgt_wh], axis=-1).astype(jnp.float32)

    criterion = DetectionCriterion(losses=['classification', 'boxes'])
    outputs = {'pred_boxes': pred_boxes, 'pred_classes': pred_classes}

    losses = criterion(outputs, targets)
    for v in losses.values():
        jax.block_until_ready(v)

    print("KERNEL_OK")
</pallas_src>

<mosaic_0001>
module attributes {stable_mosaic.version = 11 : i64} {
  func.func @_cost_kernel(%arg0: i32, %arg1: i32, %arg2: memref<1x128x8xf32, #tpu.memory_space<vmem>>, %arg3: memref<1x4x8xf32, #tpu.memory_space<vmem>>, %arg4: memref<1x128x8xbf16, #tpu.memory_space<vmem>>) attributes {dimension_semantics = [#tpu.dimension_semantics<parallel>, #tpu.dimension_semantics<parallel>], iteration_bounds = array<i64: 2, 1>, scalar_prefetch = 0 : i64, scratch_operands = 0 : i64, tpu.core_type = #tpu.core_type<tc>, window_params = [{transform_indices = @transform_0, window_bounds = array<i64: 1, 128, 8>}, {transform_indices = @transform_1, window_bounds = array<i64: 1, 4, 8>}, {transform_indices = @transform_2, window_bounds = array<i64: 1, 128, 8>}]} {
    %c0 = arith.constant 0 : index
    %c0_0 = arith.constant 0 : index
    %c0_1 = arith.constant 0 : index
    %0 = vector.load %arg3[%c0, %c0_0, %c0_1] : memref<1x4x8xf32, #tpu.memory_space<vmem>>, vector<1x4x8xf32>
    %1 = vector.shape_cast %0 : vector<1x4x8xf32> to vector<4x8xf32>
    %2 = vector.extract_strided_slice %1 {offsets = [0, 0], sizes = [1, 8], strides = [1, 1]} : vector<4x8xf32> to vector<1x8xf32>
    %3 = vector.extract_strided_slice %1 {offsets = [1, 0], sizes = [1, 8], strides = [1, 1]} : vector<4x8xf32> to vector<1x8xf32>
    %4 = vector.extract_strided_slice %1 {offsets = [2, 0], sizes = [1, 8], strides = [1, 1]} : vector<4x8xf32> to vector<1x8xf32>
    %5 = vector.extract_strided_slice %1 {offsets = [3, 0], sizes = [1, 8], strides = [1, 1]} : vector<4x8xf32> to vector<1x8xf32>
    %6 = arith.addf %2, %4 : vector<1x8xf32>
    %7 = arith.addf %3, %5 : vector<1x8xf32>
    %8 = arith.mulf %4, %5 : vector<1x8xf32>
    %c0_i32 = arith.constant 0 : i32
    %c1_i32 = arith.constant 1 : i32
    %9 = arith.muli %c0_i32, %c1_i32 : i32
    %c0_i32_2 = arith.constant 0 : i32
    %10 = arith.addi %c0_i32_2, %9 : i32
    %c128_i32 = arith.constant 128 : i32
    %11 = arith.muli %10, %c128_i32 : i32
    %12 = tpu.assume_multiple %11, 128 : i32
    %c0_3 = arith.constant 0 : index
    %13 = arith.index_cast %12 : i32 to index
    %c0_4 = arith.constant 0 : index
    %14 = vector.load %arg2[%c0_3, %13, %c0_4] : memref<1x128x8xf32, #tpu.memory_space<vmem>>, vector<1x128x8xf32>
    %15 = vector.shape_cast %14 : vector<1x128x8xf32> to vector<128x8xf32>
    %16 = vector.extract_strided_slice %15 {offsets = [0, 0], sizes = [128, 1], strides = [1, 1]} : vector<128x8xf32> to vector<128x1xf32>
    %17 = vector.extract_strided_slice %15 {offsets = [0, 1], sizes = [128, 1], strides = [1, 1]} : vector<128x8xf32> to vector<128x1xf32>
    %18 = vector.extract_strided_slice %15 {offsets = [0, 2], sizes = [128, 1], strides = [1, 1]} : vector<128x8xf32> to vector<128x1xf32>
    %19 = vector.extract_strided_slice %15 {offsets = [0, 3], sizes = [128, 1], strides = [1, 1]} : vector<128x8xf32> to vector<128x1xf32>
    %20 = vector.extract_strided_slice %15 {offsets = [0, 4], sizes = [128, 1], strides = [1, 1]} : vector<128x8xf32> to vector<128x1xf32>
    %21 = arith.addf %16, %18 : vector<128x1xf32>
    %22 = arith.addf %17, %19 : vector<128x1xf32>
    %23 = arith.mulf %18, %19 : vector<128x1xf32>
    %24 = vector.broadcast %21 : vector<128x1xf32> to vector<128x8xf32>
    %25 = vector.broadcast %6 : vector<1x8xf32> to vector<128x8xf32>
    %26 = arith.minimumf %24, %25 : vector<128x8xf32>
    %27 = vector.broadcast %16 : vector<128x1xf32> to vector<128x8xf32>
    %28 = vector.broadcast %2 : vector<1x8xf32> to vector<128x8xf32>
    %29 = arith.maximumf %27, %28 : vector<128x8xf32>
    %30 = arith.subf %26, %29 : vector<128x8xf32>
    %31 = vector.broadcast %22 : vector<128x1xf32> to vector<128x8xf32>
    %32 = vector.broadcast %7 : vector<1x8xf32> to vector<128x8xf32>
    %33 = arith.minimumf %31, %32 : vector<128x8xf32>
    %34 = vector.broadcast %17 : vector<128x1xf32> to vector<128x8xf32>
    %35 = vector.broadcast %3 : vector<1x8xf32> to vector<128x8xf32>
    %36 = arith.maximumf %34, %35 : vector<128x8xf32>
    %37 = arith.subf %33, %36 : vector<128x8xf32>
    %cst = arith.constant 0.000000e+00 : f32
    %38 = vector.broadcast %cst : f32 to vector<128x8xf32>
    %39 = arith.maximumf %30, %38 : vector<128x8xf32>
    %cst_5 = arith.constant 0.000000e+00 : f32
    %40 = vector.broadcast %cst_5 : f32 to vector<128x8xf32>
    %41 = arith.maximumf %37, %40 : vector<128x8xf32>
    %42 = arith.mulf %39, %41 : vector<128x8xf32>
    %43 = vector.broadcast %23 : vector<128x1xf32> to vector<128x8xf32>
    %44 = vector.broadcast %8 : vector<1x8xf32> to vector<128x8xf32>
    %45 = arith.addf %43, %44 : vector<128x8xf32>
    %46 = arith.subf %45, %42 : vector<128x8xf32>
    %47 = vector.broadcast %18 : vector<128x1xf32> to vector<128x8xf32>
    %48 = vector.broadcast %4 : vector<1x8xf32> to vector<128x8xf32>
    %49 = arith.addf %47, %48 : vector<128x8xf32>
    %50 = arith.subf %49, %30 : vector<128x8xf32>
    %cst_6 = arith.constant 0.000000e+00 : f32
    %51 = vector.broadcast %cst_6 : f32 to vector<128x8xf32>
    %52 = arith.maximumf %50, %51 : vector<128x8xf32>
    %53 = vector.broadcast %19 : vector<128x1xf32> to vector<128x8xf32>
    %54 = vector.broadcast %5 : vector<1x8xf32> to vector<128x8xf32>
    %55 = arith.addf %53, %54 : vector<128x8xf32>
    %56 = arith.subf %55, %37 : vector<128x8xf32>
    %cst_7 = arith.constant 0.000000e+00 : f32
    %57 = vector.broadcast %cst_7 : f32 to vector<128x8xf32>
    %58 = arith.maximumf %56, %57 : vector<128x8xf32>
    %59 = arith.mulf %52, %58 : vector<128x8xf32>
    %cst_8 = arith.constant 9.99999993E-9 : f32
    %60 = vector.broadcast %cst_8 : f32 to vector<128x8xf32>
    %61 = arith.addf %46, %60 : vector<128x8xf32>
    %62 = tpu.reciprocal %61 {approx = true} : vector<128x8xf32> -> vector<128x8xf32>
    %cst_9 = arith.constant 9.99999993E-9 : f32
    %63 = vector.broadcast %cst_9 : f32 to vector<128x8xf32>
    %64 = arith.addf %59, %63 : vector<128x8xf32>
    %65 = tpu.reciprocal %64 {approx = true} : vector<128x8xf32> -> vector<128x8xf32>
    %66 = vector.broadcast %16 : vector<128x1xf32> to vector<128x8xf32>
    %67 = vector.broadcast %2 : vector<1x8xf32> to vector<128x8xf32>
    %68 = arith.subf %66, %67 : vector<128x8xf32>
    %69 = math.absf %68 : vector<128x8xf32>
    %70 = vector.broadcast %17 : vector<128x1xf32> to vector<128x8xf32>
    %71 = vector.broadcast %3 : vector<1x8xf32> to vector<128x8xf32>
    %72 = arith.subf %70, %71 : vector<128x8xf32>
    %73 = math.absf %72 : vector<128x8xf32>
    %74 = arith.addf %69, %73 : vector<128x8xf32>
    %75 = vector.broadcast %18 : vector<128x1xf32> to vector<128x8xf32>
    %76 = vector.broadcast %4 : vector<1x8xf32> to vector<128x8xf32>
    %77 = arith.subf %75, %76 : vector<128x8xf32>
    %78 = math.absf %77 : vector<128x8xf32>
    %79 = arith.addf %74, %78 : vector<128x8xf32>
    %80 = vector.broadcast %19 : vector<128x1xf32> to vector<128x8xf32>
    %81 = vector.broadcast %5 : vector<1x8xf32> to vector<128x8xf32>
    %82 = arith.subf %80, %81 : vector<128x8xf32>
    %83 = math.absf %82 : vector<128x8xf32>
    %84 = arith.addf %79, %83 : vector<128x8xf32>
    %85 = vector.broadcast %20 : vector<128x1xf32> to vector<128x8xf32>
    %86 = arith.subf %84, %85 : vector<128x8xf32>
    %87 = arith.subf %59, %46 : vector<128x8xf32>
    %88 = arith.mulf %87, %65 : vector<128x8xf32>
    %89 = arith.addf %86, %88 : vector<128x8xf32>
    %90 = arith.mulf %42, %62 : vector<128x8xf32>
    %91 = arith.subf %89, %90 : vector<128x8xf32>
    %92 = arith.truncf %91 : vector<128x8xf32> to vector<128x8xbf16>
    %c0_10 = arith.constant 0 : index
    %93 = arith.index_cast %12 : i32 to index
    %c0_11 = arith.constant 0 : index
    %94 = vector.load %arg4[%c0_10, %93, %c0_11] : memref<1x128x8xbf16, #tpu.memory_space<vmem>>, vector<1x128x8xbf16>
    %95 = vector.shape_cast %94 : vector<1x128x8xbf16> to vector<128x8xbf16>
    %96 = vector.shape_cast %92 : vector<128x8xbf16> to vector<1x128x8xbf16>
    tpu.vector_store %arg4[%c0_10, %93, %c0_11], %96 {strides = array<i32>} : memref<1x128x8xbf16, #tpu.memory_space<vmem>>, vector<1x128x8xbf16>,
    %c1_i32_12 = arith.constant 1 : i32
    return
  }
  func.func @transform_0(%arg0: i32, %arg1: i32) -> (i32, i32, i32) {
    %c0_i32 = arith.constant 0 : i32
    %c0_i32_0 = arith.constant 0 : i32
    return %arg0, %arg1, %c0_i32 : i32, i32, i32
  }
  func.func @transform_1(%arg0: i32, %arg1: i32) -> (i32, i32, i32) {
    %c0_i32 = arith.constant 0 : i32
    %c0_i32_0 = arith.constant 0 : i32
    %c0_i32_1 = arith.constant 0 : i32
    return %arg0, %c0_i32, %c0_i32_0 : i32, i32, i32
  }
  func.func @transform_2(%arg0: i32, %arg1: i32) -> (i32, i32, i32) {
    %c0_i32 = arith.constant 0 : i32
    %c0_i32_0 = arith.constant 0 : i32
    return %arg0, %arg1, %c0_i32 : i32, i32, i32
  }
}

</mosaic_0001>

<llo_original>
// kernel: compute_cost_matrices.1
$region0: #{compute_cost_matrices.1}
  #allocation0 [shape = 'u32[]', space=smem, size = 0x4, offset = 0x4, fixed_abs, tag = 'smem constant byte address 0x4 - core index']
  #allocation1 [shape = 'u32[144,128]{1,0:T(1,128)}', space=vmem, size = 0x12000, scoped, tag = 'internal scratch']
  %s0 = inlined_call_operand.vmem [shape: f32[2,128,8], index: 0, kind: input, shape index: {}]
  %s1 = inlined_call_operand.vmem [shape: f32[2,4,8], index: 1, kind: input, shape index: {}]
  %s2 = inlined_call_operand.vmem [shape: bf16[2,128,8], index: 2, kind: output, shape index: {}]
  %s3 = sld [smem:[#allocation0]]
  $region41: #{compute_cost_matrices.1} parent=0
    _
  %s5 = ssub.s32 1, %s3
  %s6 = scalar_select 0, %s5, %s3
  loop: start=0, step=1, limit=4
  $region2: #{compute_cost_matrices.1} parent=0 // loop_pre_header
    _
  $region3: #{compute_cost_matrices.1} parent=0 // loop_header
    %s8 = sphi 0, %s12
    %p9 = scmp.ge.s32.totalorder %s8, 4
    %s15 = sphi 0, %s27
    %s16 = sphi 0, %s23
    %s17 = sphi 0, %s15
    %s18 = sphi 0, %s16
    %s19 = sphi 0, %s17
    %s20 = sphi 0, %s18
    %s32 = sphi 0, %s34
    %s35 = sphi 0, %s32
    %s36 = sphi 0, %s35
    %s52 = sphi 0, %s36
    %s58 = sphi 0, %s60
    %s61 = sphi 0, %s58
    %s62 = sphi 0, %s61
    %s78 = sphi 0, %s62
    %s86 = sphi 0, %s88
    %s89 = sphi 0, %s86
    %s90 = sphi 0, %s89
    %s106 = sphi 0, %s90
  $region4: #{compute_cost_matrices.1} parent=0 // loop_header_branch
    %11 = sbr.rel (%p9) target = $region8
  $region5: #{compute_cost_matrices.1} parent=0 // loop_body
    %s13 = ssub.s32 %s8, 1
    %s14 = ssub.s32 %s8, 2
    %s21 = sadd.s32 1, %s16
    %p22 = scmp.ge.s32.totalorder %s21, 1
    %s23 = scalar_select %p22, 0, %s21
    %s24 = sadd.s32 1, %s15
    %s25 = scalar_select %p22, %s24, %s15
    %p26 = scmp.ge.s32.totalorder %s25, 2
    %s27 = scalar_select %p26, 0, %s25
    %s28 = ssub.s32 %s15, %s27
    %s29 = ssub.s32 %s16, %s23
    %s30 = sor.u32 %s28, %s29
    %p31 = scmp.eq.s32.totalorder %s30, 0
    %s33 = sadd.s32 %s32, 1
    %s34 = scalar_select %p31, %s32, %s33
    %p37 = pneg %p31
    %p38 = scmp.eq.s32.totalorder %s8, 1
    %p39 = por %p37, %p38
    %p40 = scmp.ne.s32.totalorder %s32, %s35
    %p41 = scmp.eq.s32.totalorder %s8, 0
    %p42 = por %p40, %p41
    %p43 = scmp.ne.s32.totalorder %s32, %s35
    %p44 = scmp.eq.s32.totalorder %s13, 1
    %p45 = por %p43, %p44
    %p46 = scmp.ne.s32.totalorder %s35, %s36
    %p47 = scmp.eq.s32.totalorder %s13, 0
    %p48 = por %p46, %p47
    %p49 = scmp.ne.s32.totalorder %s35, %s36
    %p50 = scmp.eq.s32.totalorder %s14, 1
    %p51 = por %p49, %p50
    %p53 = scmp.ne.s32.totalorder %s36, %s52
    %p54 = scmp.eq.s32.totalorder %s14, 0
    %p55 = por %p53, %p54
    %s56 = ssub.s32 %s15, %s27
    %p57 = scmp.eq.s32.totalorder %s56, 0
    %s59 = sadd.s32 %s58, 1
    %s60 = scalar_select %p57, %s58, %s59
    %p63 = pneg %p57
    %p64 = scmp.eq.s32.totalorder %s8, 1
    %p65 = por %p63, %p64
    %p66 = scmp.ne.s32.totalorder %s58, %s61
    %p67 = scmp.eq.s32.totalorder %s8, 0
    %p68 = por %p66, %p67
    %p69 = scmp.ne.s32.totalorder %s58, %s61
    %p70 = scmp.eq.s32.totalorder %s13, 1
    %p71 = por %p69, %p70
    %p72 = scmp.ne.s32.totalorder %s61, %s62
    %p73 = scmp.eq.s32.totalorder %s13, 0
    %p74 = por %p72, %p73
    %p75 = scmp.ne.s32.totalorder %s61, %s62
    %p76 = scmp.eq.s32.totalorder %s14, 1
    %p77 = por %p75, %p76
    %p79 = scmp.ne.s32.totalorder %s62, %s78
    %p80 = scmp.eq.s32.totalorder %s14, 0
    %p81 = por %p79, %p80
    %s82 = ssub.s32 %s15, %s27
    %s83 = ssub.s32 %s16, %s23
    %s84 = sor.u32 %s82, %s83
    %p85 = scmp.eq.s32.totalorder %s84, 0
    %s87 = sadd.s32 %s86, 1
    %s88 = scalar_select %p85, %s86, %s87
    %p91 = pneg %p85
    %p92 = scmp.eq.s32.totalorder %s8, 1
    %p93 = por %p91, %p92
    %p94 = scmp.ne.s32.totalorder %s86, %s89
    %p95 = scmp.eq.s32.totalorder %s8, 0
    %p96 = por %p94, %p95
    %p97 = scmp.ne.s32.totalorder %s86, %s89
    %p98 = scmp.eq.s32.totalorder %s13, 1
    %p99 = por %p97, %p98
    %p100 = scmp.ne.s32.totalorder %s89, %s90
    %p101 = scmp.eq.s32.totalorder %s13, 0
    %p102 = por %p100, %p101
    %p103 = scmp.ne.s32.totalorder %s89, %s90
    %p104 = scmp.eq.s32.totalorder %s14, 1
    %p105 = por %p103, %p104
    %p107 = scmp.ne.s32.totalorder %s90, %s106
    %p108 = scmp.eq.s32.totalorder %s14, 0
    %p109 = por %p107, %p108
    %p110 = scmp.le.s32.totalorder 1, %s8
    %p111 = scmp.lt.s32.totalorder %s8, 3
    %p112 = pnand %p110, %p111
    %p113 = pneg %p112
    // Predicated region
    $region9: #{compute_cost_matrices.1} parent=5 // pred_check
      _
    $region10: #{compute_cost_matrices.1} parent=5 // pred_check_branch
      %115 = sbr.rel (%p112) target = $region12
    $region11: #{compute_cost_matrices.1} parent=5 // pred_region
      %s116 = ssub.s32 %s8, 1
    $region12: #{compute_cost_matrices.1} parent=5 // pred_fallthru
      _
    %p117 = scmp.lt.s32.totalorder %s8, 2
    // Predicated region
    $region13: #{compute_cost_matrices.1} parent=5 // pred_check
      %p118 = pneg %p117
    $region14: #{compute_cost_matrices.1} parent=5 // pred_check_branch
      %120 = sbr.rel (%p118) target = $region16
    $region15: #{compute_cost_matrices.1} parent=5 // pred_region
      // Predicated region
      $region17: #{compute_cost_matrices.1} parent=15 // pred_check
        %p121 = pneg %p42
      $region18: #{compute_cost_matrices.1} parent=15 // pred_check_branch
        %123 = sbr.rel (%p121) target = $region20
      $region19: #{compute_cost_matrices.1} parent=15 // pred_region
        %s124 = smul.u32 16, %s16
        %p125 = scmp.lt.s32.totalorder %s15, 1
        %s126 = scalar_select %p125, %s15, 1
        %p127 = scmp.lt.s32.totalorder %s124, 15
        %s128 = scalar_select %p127, %s124, 15
        %s129 = smul.addr %s126, 16
        %s130 = sadd.s32 %s128, %s129
        %s131 = smul.addr %s130, 8
        %s132 = scalar_lea.vmem %s0, %s131
        %s133 = smul.u32 16, %s16
      $region20: #{compute_cost_matrices.1} parent=15 // pred_fallthru
        _
      // Predicated region
      $region21: #{compute_cost_matrices.1} parent=15 // pred_check
        %p134 = pneg %p68
      $region22: #{compute_cost_matrices.1} parent=15 // pred_check_branch
        %136 = sbr.rel (%p134) target = $region24
      $region23: #{compute_cost_matrices.1} parent=15 // pred_region
        %p137 = scmp.lt.s32.totalorder %s15, 1
        %s138 = scalar_select %p137, %s15, 1
        %s139 = smul.addr %s138, 4
        %s140 = scalar_lea.vmem %s1, %s139
      $region24: #{compute_cost_matrices.1} parent=15 // pred_fallthru
        _
    $region16: #{compute_cost_matrices.1} parent=5 // pred_fallthru
      _
    %p141 = scmp.le.s32.totalorder 1, %s8
    %p142 = scmp.lt.s32.totalorder %s8, 3
    %p143 = pnand %p141, %p142
    %p144 = pneg %p143
    // Predicated region
    $region25: #{compute_cost_matrices.1} parent=5 // pred_check
      _
    $region26: #{compute_cost_matrices.1} parent=5 // pred_check_branch
      %146 = sbr.rel (%p143) target = $region28
    $region27: #{compute_cost_matrices.1} parent=5 // pred_region
      %s147 = ssub.s32 %s8, 1
      %s148 = smul.u32 16, %s18
      %p149 = scmp.lt.s32.totalorder %s17, 1
      %s150 = scalar_select %p149, %s17, 1
      %p151 = scmp.lt.s32.totalorder %s148, 15
      %s152 = scalar_select %p151, %s148, 15
      %s153 = smul.addr %s150, 16
      %s154 = sadd.s32 %s152, %s153
      %s155 = smul.addr %s154, 8
      %s156 = scalar_lea.vmem %s0, %s155
      %p157 = pneg %p48
      %p158 = pneg %p45
      %p159 = scmp.lt.s32.totalorder %s17, 1
      %s160 = scalar_select %p159, %s17, 1
      %s161 = smul.addr %s160, 4
      %s162 = scalar_lea.vmem %s1, %s161
      %p163 = pneg %p74
      %p164 = pneg %p71
      %p165 = pneg %p102
      %p166 = pneg %p99
      %s167 = smul.u32 16, %s18
      %p168 = scmp.lt.s32.totalorder %s17, 1
      %s169 = scalar_select %p168, %s17, 1
      %p170 = scmp.lt.s32.totalorder %s167, 15
      %s171 = scalar_select %p170, %s167, 15
      %s172 = smul.addr %s169, 16
      %s173 = sadd.s32 %s171, %s172
      %s174 = smul.addr %s173, 4
      %s175 = scalar_lea.vmem %s2, %s174
      %s176 = smul.u32 16, %s18
      %p177 = scmp.lt.s32.totalorder %s17, 1
      %s178 = scalar_select %p177, %s17, 1
      %p179 = scmp.lt.s32.totalorder %s176, 15
      %s180 = scalar_select %p179, %s176, 15
      %s181 = smul.addr %s178, 16
      %s182 = sadd.s32 %s180, %s181
      %s183 = smul.addr %s182, 8
      %s184 = scalar_lea.vmem %s0, %s183
      %s185 = smul.u32 16, %s18
      %p186 = scmp.lt.s32.totalorder %s17, 1
      %s187 = scalar_select %p186, %s17, 1
      %s188 = smul.addr %s187, 4
      %s189 = scalar_lea.vmem %s1, %s188
      %s190 = smul.u32 16, %s18
      %p191 = scmp.lt.s32.totalorder %s17, 1
      %s192 = scalar_select %p191, %s17, 1
      %p193 = scmp.lt.s32.totalorder %s190, 15
      %s194 = scalar_select %p193, %s190, 15
      %s195 = smul.addr %s192, 16
      %s196 = sadd.s32 %s194, %s195
      %s197 = smul.addr %s196, 4
      %s198 = scalar_lea.vmem %s2, %s197
      %s199 = smul.u32 16, %s18
      %v200 = vld [vmem:[%s189] sm:$0xf]
      %v202 = vrot.slane %v200, 2
      %v204 = vadd.f32 %v200, %v202
      %v205 = vrot.slane %v200, 1
      %v207 = vmul.f32 %v200, %v205
      %v208 = vld [vmem:[%s184] sm:$0xff]
      %v209 = vld [vmem:[%s184 + $0x8] sm:$0xff]
      %v210 = vld [vmem:[%s184 + $0x10] sm:$0xff]
      %v211 = vld [vmem:[%s184 + $0x18] sm:$0xff]
      %v212 = vld [vmem:[%s184 + $0x20] sm:$0xff]
      %v213 = vld [vmem:[%s184 + $0x28] sm:$0xff]
      %v214 = vld [vmem:[%s184 + $0x30] sm:$0xff]
      %v215 = vld [vmem:[%s184 + $0x38] sm:$0xff]
      %v216 = vld [vmem:[%s184 + $0x40] sm:$0xff]
      %v217 = vld [vmem:[%s184 + $0x48] sm:$0xff]
      %v218 = vld [vmem:[%s184 + $0x50] sm:$0xff]
      %v219 = vld [vmem:[%s184 + $0x58] sm:$0xff]
      %v220 = vld [vmem:[%s184 + $0x60] sm:$0xff]
      %v221 = vld [vmem:[%s184 + $0x68] sm:$0xff]
      %v222 = vld [vmem:[%s184 + $0x70] sm:$0xff]
      %v223 = vld [vmem:[%s184 + $0x78] sm:$0xff]
      %240 = vrot.lane.b32.xlu0 %v208, 126
      %v241 = vpop.permute.xlu0 %240
      %242 = vrot.lane.b32.xlu0 %v209, 126
      %v243 = vpop.permute.xlu0 %242
      %244 = vrot.lane.b32.xlu0 %v210, 126
      %v245 = vpop.permute.xlu0 %244
      %246 = vrot.lane.b32.xlu0 %v211, 126
      %v247 = vpop.permute.xlu0 %246
      %248 = vrot.lane.b32.xlu0 %v212, 126
      %v249 = vpop.permute.xlu0 %248
      %250 = vrot.lane.b32.xlu0 %v213, 126
      %v251 = vpop.permute.xlu0 %250
      %252 = vrot.lane.b32.xlu0 %v214, 126
      %v253 = vpop.permute.xlu0 %252
      %254 = vrot.lane.b32.xlu0 %v215, 126
      %v255 = vpop.permute.xlu0 %254
      %256 = vrot.lane.b32.xlu0 %v216, 126
      %v257 = vpop.permute.xlu0 %256
      %258 = vrot.lane.b32.xlu0 %v217, 126
      %v259 = vpop.permute.xlu0 %258
      %260 = vrot.lane.b32.xlu0 %v218, 126
      %v261 = vpop.permute.xlu0 %260
      %262 = vrot.lane.b32.xlu0 %v219, 126
      %v263 = vpop.permute.xlu0 %262
      %264 = vrot.lane.b32.xlu0 %v220, 126
      %v265 = vpop.permute.xlu0 %264
      %266 = vrot.lane.b32.xlu0 %v221, 126
      %v267 = vpop.permute.xlu0 %266
      %268 = vrot.lane.b32.xlu0 %v222, 126
      %v269 = vpop.permute.xlu0 %268
      %270 = vrot.lane.b32.xlu0 %v223, 126
      %v271 = vpop.permute.xlu0 %270
      %v288 = vadd.f32 %v208, %v241
      %v289 = vadd.f32 %v209, %v243
      %v290 = vadd.f32 %v210, %v245
      %v291 = vadd.f32 %v211, %v247
      %v292 = vadd.f32 %v212, %v249
      %v293 = vadd.f32 %v213, %v251
      %v294 = vadd.f32 %v214, %v253
      %v295 = vadd.f32 %v215, %v255
      %v296 = vadd.f32 %v216, %v257
      %v297 = vadd.f32 %v217, %v259
      %v298 = vadd.f32 %v218, %v261
      %v299 = vadd.f32 %v219, %v263
      %v300 = vadd.f32 %v220, %v265
      %v301 = vadd.f32 %v221, %v267
      %v302 = vadd.f32 %v222, %v269
      %v303 = vadd.f32 %v223, %v271
      %304 = vrot.lane.b32.xlu0 %v208, 127
      %v305 = vpop.permute.xlu0 %304
      %306 = vrot.lane.b32.xlu0 %v209, 127
      %v307 = vpop.permute.xlu0 %306
      %308 = vrot.lane.b32.xlu0 %v210, 127
      %v309 = vpop.permute.xlu0 %308
      %310 = vrot.lane.b32.xlu0 %v211, 127
      %v311 = vpop.permute.xlu0 %310
      %312 = vrot.lane.b32.xlu0 %v212, 127
      %v313 = vpop.permute.xlu0 %312
      %314 = vrot.lane.b32.xlu0 %v213, 127
      %v315 = vpop.permute.xlu0 %314
      %316 = vrot.lane.b32.xlu0 %v214, 127
      %v317 = vpop.permute.xlu0 %316
      %318 = vrot.lane.b32.xlu0 %v215, 127
      %v319 = vpop.permute.xlu0 %318
      %320 = vrot.lane.b32.xlu0 %v216, 127
      %v321 = vpop.permute.xlu0 %320
      %322 = vrot.lane.b32.xlu0 %v217, 127
      %v323 = vpop.permute.xlu0 %322
      %324 = vrot.lane.b32.xlu0 %v218, 127
      %v325 = vpop.permute.xlu0 %324
      %326 = vrot.lane.b32.xlu0 %v219, 127
      %v327 = vpop.permute.xlu0 %326
      %328 = vrot.lane.b32.xlu0 %v220, 127
      %v329 = vpop.permute.xlu0 %328
      %330 = vrot.lane.b32.xlu0 %v221, 127
      %v331 = vpop.permute.xlu0 %330
      %332 = vrot.lane.b32.xlu0 %v222, 127
      %v333 = vpop.permute.xlu0 %332
      %334 = vrot.lane.b32.xlu0 %v223, 127
      %v335 = vpop.permute.xlu0 %334
      %v352 = vmul.f32 %v208, %v305
      %v353 = vmul.f32 %v209, %v307
      %v354 = vmul.f32 %v210, %v309
      %v355 = vmul.f32 %v211, %v311
      %v356 = vmul.f32 %v212, %v313
      %v357 = vmul.f32 %v213, %v315
      %v358 = vmul.f32 %v214, %v317
      %v359 = vmul.f32 %v215, %v319
      %v360 = vmul.f32 %v216, %v321
      %v361 = vmul.f32 %v217, %v323
      %v362 = vmul.f32 %v218, %v325
      %v363 = vmul.f32 %v219, %v327
      %v364 = vmul.f32 %v220, %v329
      %v365 = vmul.f32 %v221, %v331
      %v366 = vmul.f32 %v222, %v333
      %v367 = vmul.f32 %v223, %v335
      %369 = vset.pattern.permute.xlu0 0
      %370 = vperm.xlu0 %369, %v288
      %v371 = vpop.permute.xlu0 %370
      %374 = vset.pattern.permute.xlu0 0
      %375 = vperm.xlu0 %374, %v289
      %v376 = vpop.permute.xlu0 %375
      %379 = vset.pattern.permute.xlu0 0
      %380 = vperm.xlu0 %379, %v290
      %v381 = vpop.permute.xlu0 %380
      %384 = vset.pattern.permute.xlu0 0
      %385 = vperm.xlu0 %384, %v291
      %v386 = vpop.permute.xlu0 %385
      %389 = vset.pattern.permute.xlu0 0
      %390 = vperm.xlu0 %389, %v292
      %v391 = vpop.permute.xlu0 %390
      %394 = vset.pattern.permute.xlu0 0
      %395 = vperm.xlu0 %394, %v293
      %v396 = vpop.permute.xlu0 %395
      %399 = vset.pattern.permute.xlu0 0
      %400 = vperm.xlu0 %399, %v294
      %v401 = vpop.permute.xlu0 %400
      %404 = vset.pattern.permute.xlu0 0
      %405 = vperm.xlu0 %404, %v295
      %v406 = vpop.permute.xlu0 %405
      %409 = vset.pattern.permute.xlu0 0
      %410 = vperm.xlu0 %409, %v296
      %v411 = vpop.permute.xlu0 %410
      %414 = vset.pattern.permute.xlu0 0
      %415 = vperm.xlu0 %414, %v297
      %v416 = vpop.permute.xlu0 %415
      %419 = vset.pattern.permute.xlu0 0
      %420 = vperm.xlu0 %419, %v298
      %v421 = vpop.permute.xlu0 %420
      %424 = vset.pattern.permute.xlu0 0
      %425 = vperm.xlu0 %424, %v299
      %v426 = vpop.permute.xlu0 %425
      %429 = vset.pattern.permute.xlu0 0
      %430 = vperm.xlu0 %429, %v300
      %v431 = vpop.permute.xlu0 %430
      %434 = vset.pattern.permute.xlu0 0
      %435 = vperm.xlu0 %434, %v301
      %v436 = vpop.permute.xlu0 %435
      %439 = vset.pattern.permute.xlu0 0
      %440 = vperm.xlu0 %439, %v302
      %v441 = vpop.permute.xlu0 %440
      %444 = vset.pattern.permute.xlu0 0
      %445 = vperm.xlu0 %444, %v303
      %v446 = vpop.permute.xlu0 %445
      %v448 = vlaneseq
      %v449 = vshrl.u32 %v448, 7
      %v450 = vsub.s32 0, %v449
      %v451 = vrot.slane %v204, %v450
      %v452 = vmin.f32 %v371, %v451
      %v453 = vmin.f32 %v376, %v451
      %v454 = vmin.f32 %v381, %v451
      %v455 = vmin.f32 %v386, %v451
      %v456 = vmin.f32 %v391, %v451
      %v457 = vmin.f32 %v396, %v451
      %v458 = vmin.f32 %v401, %v451
      %v459 = vmin.f32 %v406, %v451
      %v460 = vmin.f32 %v411, %v451
      %v461 = vmin.f32 %v416, %v451
      %v462 = vmin.f32 %v421, %v451
      %v463 = vmin.f32 %v426, %v451
      %v464 = vmin.f32 %v431, %v451
      %v465 = vmin.f32 %v436, %v451
      %v466 = vmin.f32 %v441, %v451
      %v467 = vmin.f32 %v446, %v451
      %468 = vset.pattern.permute.xlu0 0
      %469 = vperm.xlu0 %468, %v208
      %v470 = vpop.permute.xlu0 %469
      %472 = vset.pattern.permute.xlu0 0
      %473 = vperm.xlu0 %472, %v209
      %v474 = vpop.permute.xlu0 %473
      %476 = vset.pattern.permute.xlu0 0
      %477 = vperm.xlu0 %476, %v210
      %v478 = vpop.permute.xlu0 %477
      %480 = vset.pattern.permute.xlu0 0
      %481 = vperm.xlu0 %480, %v211
      %v482 = vpop.permute.xlu0 %481
      %484 = vset.pattern.permute.xlu0 0
      %485 = vperm.xlu0 %484, %v212
      %v486 = vpop.permute.xlu0 %485
      %488 = vset.pattern.permute.xlu0 0
      %489 = vperm.xlu0 %488, %v213
      %v490 = vpop.permute.xlu0 %489
      %492 = vset.pattern.permute.xlu0 0
      %493 = vperm.xlu0 %492, %v214
      %v494 = vpop.permute.xlu0 %493
      %496 = vset.pattern.permute.xlu0 0
      %497 = vperm.xlu0 %496, %v215
      %v498 = vpop.permute.xlu0 %497
      %500 = vset.pattern.permute.xlu0 0
      %501 = vperm.xlu0 %500, %v216
      %v502 = vpop.permute.xlu0 %501
      %504 = vset.pattern.permute.xlu0 0
      %505 = vperm.xlu0 %504, %v217
      %v506 = vpop.permute.xlu0 %505
      %508 = vset.pattern.permute.xlu0 0
      %509 = vperm.xlu0 %508, %v218
      %v510 = vpop.permute.xlu0 %509
      %512 = vset.pattern.permute.xlu0 0
      %513 = vperm.xlu0 %512, %v219
      %v514 = vpop.permute.xlu0 %513
      %516 = vset.pattern.permute.xlu0 0
      %517 = vperm.xlu0 %516, %v220
      %v518 = vpop.permute.xlu0 %517
      %520 = vset.pattern.permute.xlu0 0
      %521 = vperm.xlu0 %520, %v221
      %v522 = vpop.permute.xlu0 %521
      %524 = vset.pattern.permute.xlu0 0
      %525 = vperm.xlu0 %524, %v222
      %v526 = vpop.permute.xlu0 %525
      %528 = vset.pattern.permute.xlu0 0
      %529 = vperm.xlu0 %528, %v223
      %v530 = vpop.permute.xlu0 %529
      %v532 = vlaneseq
      %v533 = vshrl.u32 %v532, 7
      %v534 = vsub.s32 0, %v533
      %v535 = vrot.slane %v200, %v534
      %v536 = vmax.f32 %v470, %v535
      %v537 = vmax.f32 %v474, %v535
      %v538 = vmax.f32 %v478, %v535
      %v539 = vmax.f32 %v482, %v535
      %v540 = vmax.f32 %v486, %v535
      %v541 = vmax.f32 %v490, %v535
      %v542 = vmax.f32 %v494, %v535
      %v543 = vmax.f32 %v498, %v535
      %v544 = vmax.f32 %v502, %v535
      %v545 = vmax.f32 %v506, %v535
      %v546 = vmax.f32 %v510, %v535
      %v547 = vmax.f32 %v514, %v535
      %v548 = vmax.f32 %v518, %v535
      %v549 = vmax.f32 %v522, %v535
      %v550 = vmax.f32 %v526, %v535
      %v551 = vmax.f32 %v530, %v535
      %v552 = vsub.f32 %v452, %v536
      %v553 = vsub.f32 %v453, %v537
      %v554 = vsub.f32 %v454, %v538
      %v555 = vsub.f32 %v455, %v539
      %v556 = vsub.f32 %v456, %v540
      %v557 = vsub.f32 %v457, %v541
      %v558 = vsub.f32 %v458, %v542
      %v559 = vsub.f32 %v459, %v543
      %v560 = vsub.f32 %v460, %v544
      %v561 = vsub.f32 %v461, %v545
      %v562 = vsub.f32 %v462, %v546
      %v563 = vsub.f32 %v463, %v547
      %v564 = vsub.f32 %v464, %v548
      %v565 = vsub.f32 %v465, %v549
      %v566 = vsub.f32 %v466, %v550
      %v567 = vsub.f32 %v467, %v551
      %568 = vset.pattern.permute.xlu0 1
      %569 = vperm.xlu0 %568, %v288
      %v570 = vpop.permute.xlu0 %569
      %572 = vset.pattern.permute.xlu0 1
      %573 = vperm.xlu0 %572, %v289
      %v574 = vpop.permute.xlu0 %573
      %576 = vset.pattern.permute.xlu0 1
      %577 = vperm.xlu0 %576, %v290
      %v578 = vpop.permute.xlu0 %577
      %580 = vset.pattern.permute.xlu0 1
      %581 = vperm.xlu0 %580, %v291
      %v582 = vpop.permute.xlu0 %581
      %584 = vset.pattern.permute.xlu0 1
      %585 = vperm.xlu0 %584, %v292
      %v586 = vpop.permute.xlu0 %585
      %588 = vset.pattern.permute.xlu0 1
      %589 = vperm.xlu0 %588, %v293
      %v590 = vpop.permute.xlu0 %589
      %592 = vset.pattern.permute.xlu0 1
      %593 = vperm.xlu0 %592, %v294
      %v594 = vpop.permute.xlu0 %593
      %596 = vset.pattern.permute.xlu0 1
      %597 = vperm.xlu0 %596, %v295
      %v598 = vpop.permute.xlu0 %597
      %600 = vset.pattern.permute.xlu0 1
      %601 = vperm.xlu0 %600, %v296
      %v602 = vpop.permute.xlu0 %601
      %604 = vset.pattern.permute.xlu0 1
      %605 = vperm.xlu0 %604, %v297
      %v606 = vpop.permute.xlu0 %605
      %608 = vset.pattern.permute.xlu0 1
      %609 = vperm.xlu0 %608, %v298
      %v610 = vpop.permute.xlu0 %609
      %612 = vset.pattern.permute.xlu0 1
      %613 = vperm.xlu0 %612, %v299
      %v614 = vpop.permute.xlu0 %613
      %616 = vset.pattern.permute.xlu0 1
      %617 = vperm.xlu0 %616, %v300
      %v618 = vpop.permute.xlu0 %617
      %620 = vset.pattern.permute.xlu0 1
      %621 = vperm.xlu0 %620, %v301
      %v622 = vpop.permute.xlu0 %621
      %624 = vset.pattern.permute.xlu0 1
      %625 = vperm.xlu0 %624, %v302
      %v626 = vpop.permute.xlu0 %625
      %628 = vset.pattern.permute.xlu0 1
      %629 = vperm.xlu0 %628, %v303
      %v630 = vpop.permute.xlu0 %629
      %v632 = vlaneseq
      %v633 = vshrl.u32 %v632, 7
      %v634 = vsub.s32 1, %v633
      %v635 = vrot.slane %v204, %v634
      %v636 = vmin.f32 %v570, %v635
      %v637 = vmin.f32 %v574, %v635
      %v638 = vmin.f32 %v578, %v635
      %v639 = vmin.f32 %v582, %v635
      %v640 = vmin.f32 %v586, %v635
      %v641 = vmin.f32 %v590, %v635
      %v642 = vmin.f32 %v594, %v635
      %v643 = vmin.f32 %v598, %v635
      %v644 = vmin.f32 %v602, %v635
      %v645 = vmin.f32 %v606, %v635
      %v646 = vmin.f32 %v610, %v635
      %v647 = vmin.f32 %v614, %v635
      %v648 = vmin.f32 %v618, %v635
      %v649 = vmin.f32 %v622, %v635
      %v650 = vmin.f32 %v626, %v635
      %v651 = vmin.f32 %v630, %v635
      %652 = vset.pattern.permute.xlu0 1
      %653 = vperm.xlu0 %652, %v208
      %v654 = vpop.permute.xlu0 %653
      %656 = vset.pattern.permute.xlu0 1
      %657 = vperm.xlu0 %656, %v209
      %v658 = vpop.permute.xlu0 %657
      %660 = vset.pattern.permute.xlu0 1
      %661 = vperm.xlu0 %660, %v210
      %v662 = vpop.permute.xlu0 %661
      %664 = vset.pattern.permute.xlu0 1
      %665 = vperm.xlu0 %664, %v211
      %v666 = vpop.permute.xlu0 %665
      %668 = vset.pattern.permute.xlu0 1
      %669 = vperm.xlu0 %668, %v212
      %v670 = vpop.permute.xlu0 %669
      %672 = vset.pattern.permute.xlu0 1
      %673 = vperm.xlu0 %672, %v213
      %v674 = vpop.permute.xlu0 %673
      %676 = vset.pattern.permute.xlu0 1
      %677 = vperm.xlu0 %676, %v214
      %v678 = vpop.permute.xlu0 %677
      %680 = vset.pattern.permute.xlu0 1
      %681 = vperm.xlu0 %680, %v215
      %v682 = vpop.permute.xlu0 %681
      %684 = vset.pattern.permute.xlu0 1
      %685 = vperm.xlu0 %684, %v216
      %v686 = vpop.permute.xlu0 %685
      %688 = vset.pattern.permute.xlu0 1
      %689 = vperm.xlu0 %688, %v217
      %v690 = vpop.permute.xlu0 %689
      %692 = vset.pattern.permute.xlu0 1
      %693 = vperm.xlu0 %692, %v218
      %v694 = vpop.permute.xlu0 %693
      %696 = vset.pattern.permute.xlu0 1
      %697 = vperm.xlu0 %696, %v219
      %v698 = vpop.permute.xlu0 %697
      %700 = vset.pattern.permute.xlu0 1
      %701 = vperm.xlu0 %700, %v220
      %v702 = vpop.permute.xlu0 %701
      %704 = vset.pattern.permute.xlu0 1
      %705 = vperm.xlu0 %704, %v221
      %v706 = vpop.permute.xlu0 %705
      %708 = vset.pattern.permute.xlu0 1
      %709 = vperm.xlu0 %708, %v222
      %v710 = vpop.permute.xlu0 %709
      %712 = vset.pattern.permute.xlu0 1
      %713 = vperm.xlu0 %712, %v223
      %v714 = vpop.permute.xlu0 %713
      %v716 = vlaneseq
      %v717 = vshrl.u32 %v716, 7
      %v718 = vsub.s32 1, %v717
      %v719 = vrot.slane %v200, %v718
      %v720 = vmax.f32 %v654, %v719
      %v721 = vmax.f32 %v658, %v719
      %v722 = vmax.f32 %v662, %v719
      %v723 = vmax.f32 %v666, %v719
      %v724 = vmax.f32 %v670, %v719
      %v725 = vmax.f32 %v674, %v719
      %v726 = vmax.f32 %v678, %v719
      %v727 = vmax.f32 %v682, %v719
      %v728 = vmax.f32 %v686, %v719
      %v729 = vmax.f32 %v690, %v719
      %v730 = vmax.f32 %v694, %v719
      %v731 = vmax.f32 %v698, %v719
      %v732 = vmax.f32 %v702, %v719
      %v733 = vmax.f32 %v706, %v719
      %v734 = vmax.f32 %v710, %v719
      %v735 = vmax.f32 %v714, %v719
      %v736 = vsub.f32 %v636, %v720
      %v737 = vsub.f32 %v637, %v721
      %v738 = vsub.f32 %v638, %v722
      %v739 = vsub.f32 %v639, %v723
      %v740 = vsub.f32 %v640, %v724
      %v741 = vsub.f32 %v641, %v725
      %v742 = vsub.f32 %v642, %v726
      %v743 = vsub.f32 %v643, %v727
      %v744 = vsub.f32 %v644, %v728
      %v745 = vsub.f32 %v645, %v729
      %v746 = vsub.f32 %v646, %v730
      %v747 = vsub.f32 %v647, %v731
      %v748 = vsub.f32 %v648, %v732
      %v749 = vsub.f32 %v649, %v733
      %v750 = vsub.f32 %v650, %v734
      %v751 = vsub.f32 %v651, %v735
      %v752 = vmax.f32 %v552, 0.0
      %v753 = vmax.f32 %v553, 0.0
      %v754 = vmax.f32 %v554, 0.0
      %v755 = vmax.f32 %v555, 0.0
      %v756 = vmax.f32 %v556, 0.0
      %v757 = vmax.f32 %v557, 0.0
      %v758 = vmax.f32 %v558, 0.0
      %v759 = vmax.f32 %v559, 0.0
      %v760 = vmax.f32 %v560, 0.0
      %v761 = vmax.f32 %v561, 0.0
      %v762 = vmax.f32 %v562, 0.0
      %v763 = vmax.f32 %v563, 0.0
      %v764 = vmax.f32 %v564, 0.0
      %v765 = vmax.f32 %v565, 0.0
      %v766 = vmax.f32 %v566, 0.0
      %v767 = vmax.f32 %v567, 0.0
      %v768 = vmax.f32 %v736, 0.0
      %v769 = vmax.f32 %v737, 0.0
      %v770 = vmax.f32 %v738, 0.0
      %v771 = vmax.f32 %v739, 0.0
      %v772 = vmax.f32 %v740, 0.0
      %v773 = vmax.f32 %v741, 0.0
      %v774 = vmax.f32 %v742, 0.0
      %v775 = vmax.f32 %v743, 0.0
      %v776 = vmax.f32 %v744, 0.0
      %v777 = vmax.f32 %v745, 0.0
      %v778 = vmax.f32 %v746, 0.0
      %v779 = vmax.f32 %v747, 0.0
      %v780 = vmax.f32 %v748, 0.0
      %v781 = vmax.f32 %v749, 0.0
      %v782 = vmax.f32 %v750, 0.0
      %v783 = vmax.f32 %v751, 0.0
      %v784 = vmul.f32 %v752, %v768
      %v785 = vmul.f32 %v753, %v769
      %v786 = vmul.f32 %v754, %v770
      %v787 = vmul.f32 %v755, %v771
      %v788 = vmul.f32 %v756, %v772
      %v789 = vmul.f32 %v757, %v773
      %v790 = vmul.f32 %v758, %v774
      %v791 = vmul.f32 %v759, %v775
      %v792 = vmul.f32 %v760, %v776
      %v793 = vmul.f32 %v761, %v777
      %v794 = vmul.f32 %v762, %v778
      %v795 = vmul.f32 %v763, %v779
      %v796 = vmul.f32 %v764, %v780
      %v797 = vmul.f32 %v765, %v781
      %v798 = vmul.f32 %v766, %v782
      %v799 = vmul.f32 %v767, %v783
      %801 = vset.pattern.permute.xlu0 2
      %802 = vperm.xlu0 %801, %v352
      %v803 = vpop.permute.xlu0 %802
      %806 = vset.pattern.permute.xlu0 2
      %807 = vperm.xlu0 %806, %v353
      %v808 = vpop.permute.xlu0 %807
      %811 = vset.pattern.permute.xlu0 2
      %812 = vperm.xlu0 %811, %v354
      %v813 = vpop.permute.xlu0 %812
      %816 = vset.pattern.permute.xlu0 2
      %817 = vperm.xlu0 %816, %v355
      %v818 = vpop.permute.xlu0 %817
      %821 = vset.pattern.permute.xlu0 2
      %822 = vperm.xlu0 %821, %v356
      %v823 = vpop.permute.xlu0 %822
      %826 = vset.pattern.permute.xlu0 2
      %827 = vperm.xlu0 %826, %v357
      %v828 = vpop.permute.xlu0 %827
      %831 = vset.pattern.permute.xlu0 2
      %832 = vperm.xlu0 %831, %v358
      %v833 = vpop.permute.xlu0 %832
      %836 = vset.pattern.permute.xlu0 2
      %837 = vperm.xlu0 %836, %v359
      %v838 = vpop.permute.xlu0 %837
      %841 = vset.pattern.permute.xlu0 2
      %842 = vperm.xlu0 %841, %v360
      %v843 = vpop.permute.xlu0 %842
      %846 = vset.pattern.permute.xlu0 2
      %847 = vperm.xlu0 %846, %v361
      %v848 = vpop.permute.xlu0 %847
      %851 = vset.pattern.permute.xlu0 2
      %852 = vperm.xlu0 %851, %v362
      %v853 = vpop.permute.xlu0 %852
      %856 = vset.pattern.permute.xlu0 2
      %857 = vperm.xlu0 %856, %v363
      %v858 = vpop.permute.xlu0 %857
      %861 = vset.pattern.permute.xlu0 2
      %862 = vperm.xlu0 %861, %v364
      %v863 = vpop.permute.xlu0 %862
      %866 = vset.pattern.permute.xlu0 2
      %867 = vperm.xlu0 %866, %v365
      %v868 = vpop.permute.xlu0 %867
      %871 = vset.pattern.permute.xlu0 2
      %872 = vperm.xlu0 %871, %v366
      %v873 = vpop.permute.xlu0 %872
      %876 = vset.pattern.permute.xlu0 2
      %877 = vperm.xlu0 %876, %v367
      %v878 = vpop.permute.xlu0 %877
      %v880 = vlaneseq
      %v881 = vshrl.u32 %v880, 7
      %v882 = vsub.s32 2, %v881
      %v883 = vrot.slane %v207, %v882
      %v884 = vadd.f32 %v803, %v883
      %v885 = vadd.f32 %v808, %v883
      %v886 = vadd.f32 %v813, %v883
      %v887 = vadd.f32 %v818, %v883
      %v888 = vadd.f32 %v823, %v883
      %v889 = vadd.f32 %v828, %v883
      %v890 = vadd.f32 %v833, %v883
      %v891 = vadd.f32 %v838, %v883
      %v892 = vadd.f32 %v843, %v883
      %v893 = vadd.f32 %v848, %v883
      %v894 = vadd.f32 %v853, %v883
      %v895 = vadd.f32 %v858, %v883
      %v896 = vadd.f32 %v863, %v883
      %v897 = vadd.f32 %v868, %v883
      %v898 = vadd.f32 %v873, %v883
      %v899 = vadd.f32 %v878, %v883
      %v900 = vsub.f32 %v884, %v784
      %v901 = vsub.f32 %v885, %v785
      %v902 = vsub.f32 %v886, %v786
      %v903 = vsub.f32 %v887, %v787
      %v904 = vsub.f32 %v888, %v788
      %v905 = vsub.f32 %v889, %v789
      %v906 = vsub.f32 %v890, %v790
      %v907 = vsub.f32 %v891, %v791
      %v908 = vsub.f32 %v892, %v792
      %v909 = vsub.f32 %v893, %v793
      %v910 = vsub.f32 %v894, %v794
      %v911 = vsub.f32 %v895, %v795
      %v912 = vsub.f32 %v896, %v796
      %v913 = vsub.f32 %v897, %v797
      %v914 = vsub.f32 %v898, %v798
      %v915 = vsub.f32 %v899, %v799
      %916 = vset.pattern.permute.xlu0 2
      %917 = vperm.xlu0 %916, %v208
      %v918 = vpop.permute.xlu0 %917
      %920 = vset.pattern.permute.xlu0 2
      %921 = vperm.xlu0 %920, %v209
      %v922 = vpop.permute.xlu0 %921
      %924 = vset.pattern.permute.xlu0 2
      %925 = vperm.xlu0 %924, %v210
      %v926 = vpop.permute.xlu0 %925
      %928 = vset.pattern.permute.xlu0 2
      %929 = vperm.xlu0 %928, %v211
      %v930 = vpop.permute.xlu0 %929
      %932 = vset.pattern.permute.xlu0 2
      %933 = vperm.xlu0 %932, %v212
      %v934 = vpop.permute.xlu0 %933
      %936 = vset.pattern.permute.xlu0 2
      %937 = vperm.xlu0 %936, %v213
      %v938 = vpop.permute.xlu0 %937
      %940 = vset.pattern.permute.xlu0 2
      %941 = vperm.xlu0 %940, %v214
      %v942 = vpop.permute.xlu0 %941
      %944 = vset.pattern.permute.xlu0 2
      %945 = vperm.xlu0 %944, %v215
      %v946 = vpop.permute.xlu0 %945
      %948 = vset.pattern.permute.xlu0 2
      %949 = vperm.xlu0 %948, %v216
      %v950 = vpop.permute.xlu0 %949
      %952 = vset.pattern.permute.xlu0 2
      %953 = vperm.xlu0 %952, %v217
      %v954 = vpop.permute.xlu0 %953
      %956 = vset.pattern.permute.xlu0 2
      %957 = vperm.xlu0 %956, %v218
      %v958 = vpop.permute.xlu0 %957
      %960 = vset.pattern.permute.xlu0 2
      %961 = vperm.xlu0 %960, %v219
      %v962 = vpop.permute.xlu0 %961
      %964 = vset.pattern.permute.xlu0 2
      %965 = vperm.xlu0 %964, %v220
      %v966 = vpop.permute.xlu0 %965
      %968 = vset.pattern.permute.xlu0 2
      %969 = vperm.xlu0 %968, %v221
      %v970 = vpop.permute.xlu0 %969
      %972 = vset.pattern.permute.xlu0 2
      %973 = vperm.xlu0 %972, %v222
      %v974 = vpop.permute.xlu0 %973
      %976 = vset.pattern.permute.xlu0 2
      %977 = vperm.xlu0 %976, %v223
      %v978 = vpop.permute.xlu0 %977
      %v980 = vlaneseq
      %v981 = vshrl.u32 %v980, 7
      %v982 = vsub.s32 2, %v981
      %v983 = vrot.slane %v200, %v982
      %v984 = vadd.f32 %v918, %v983
      %v985 = vadd.f32 %v922, %v983
      %v986 = vadd.f32 %v926, %v983
      %v987 = vadd.f32 %v930, %v983
      %v988 = vadd.f32 %v934, %v983
      %v989 = vadd.f32 %v938, %v983
      %v990 = vadd.f32 %v942, %v983
      %v991 = vadd.f32 %v946, %v983
      %v992 = vadd.f32 %v950, %v983
      %v993 = vadd.f32 %v954, %v983
      %v994 = vadd.f32 %v958, %v983
      %v995 = vadd.f32 %v962, %v983
      %v996 = vadd.f32 %v966, %v983
      %v997 = vadd.f32 %v970, %v983
      %v998 = vadd.f32 %v974, %v983
      %v999 = vadd.f32 %v978, %v983
      %v1000 = vsub.f32 %v984, %v552
      %v1001 = vsub.f32 %v985, %v553
      %v1002 = vsub.f32 %v986, %v554
      %v1003 = vsub.f32 %v987, %v555
      %v1004 = vsub.f32 %v988, %v556
      %v1005 = vsub.f32 %v989, %v557
      %v1006 = vsub.f32 %v990, %v558
      %v1007 = vsub.f32 %v991, %v559
      %v1008 = vsub.f32 %v992, %v560
      %v1009 = vsub.f32 %v993, %v561
      %v1010 = vsub.f32 %v994, %v562
      %v1011 = vsub.f32 %v995, %v563
      %v1012 = vsub.f32 %v996, %v564
      %v1013 = vsub.f32 %v997, %v565
      %v1014 = vsub.f32 %v998, %v566
      %v1015 = vsub.f32 %v999, %v567
      %v1016 = vmax.f32 %v1000, 0.0
      %v1017 = vmax.f32 %v1001, 0.0
      %v1018 = vmax.f32 %v1002, 0.0
      %v1019 = vmax.f32 %v1003, 0.0
      %v1020 = vmax.f32 %v1004, 0.0
      %v1021 = vmax.f32 %v1005, 0.0
      %v1022 = vmax.f32 %v1006, 0.0
      %v1023 = vmax.f32 %v1007, 0.0
      %v1024 = vmax.f32 %v1008, 0.0
      %v1025 = vmax.f32 %v1009, 0.0
      %v1026 = vmax.f32 %v1010, 0.0
      %v1027 = vmax.f32 %v1011, 0.0
      %v1028 = vmax.f32 %v1012, 0.0
      %v1029 = vmax.f32 %v1013, 0.0
      %v1030 = vmax.f32 %v1014, 0.0
      %v1031 = vmax.f32 %v1015, 0.0
      %1032 = vset.pattern.permute.xlu0 3
      %1033 = vperm.xlu0 %1032, %v208
      %v1034 = vpop.permute.xlu0 %1033
      %1036 = vset.pattern.permute.xlu0 3
      %1037 = vperm.xlu0 %1036, %v209
      %v1038 = vpop.permute.xlu0 %1037
      %1040 = vset.pattern.permute.xlu0 3
      %1041 = vperm.xlu0 %1040, %v210
      %v1042 = vpop.permute.xlu0 %1041
      %1044 = vset.pattern.permute.xlu0 3
      %1045 = vperm.xlu0 %1044, %v211
      %v1046 = vpop.permute.xlu0 %1045
      %1048 = vset.pattern.permute.xlu0 3
      %1049 = vperm.xlu0 %1048, %v212
      %v1050 = vpop.permute.xlu0 %1049
      %1052 = vset.pattern.permute.xlu0 3
      %1053 = vperm.xlu0 %1052, %v213
      %v1054 = vpop.permute.xlu0 %1053
      %1056 = vset.pattern.permute.xlu0 3
      %1057 = vperm.xlu0 %1056, %v214
      %v1058 = vpop.permute.xlu0 %1057
      %1060 = vset.pattern.permute.xlu0 3
      %1061 = vperm.xlu0 %1060, %v215
      %v1062 = vpop.permute.xlu0 %1061
      %1064 = vset.pattern.permute.xlu0 3
      %1065 = vperm.xlu0 %1064, %v216
      %v1066 = vpop.permute.xlu0 %1065
      %1068 = vset.pattern.permute.xlu0 3
      %1069 = vperm.xlu0 %1068, %v217
      %v1070 = vpop.permute.xlu0 %1069
      %1072 = vset.pattern.permute.xlu0 3
      %1073 = vperm.xlu0 %1072, %v218
      %v1074 = vpop.permute.xlu0 %1073
      %1076 = vset.pattern.permute.xlu0 3
      %1077 = vperm.xlu0 %1076, %v219
      %v1078 = vpop.permute.xlu0 %1077
      %1080 = vset.pattern.permute.xlu0 3
      %1081 = vperm.xlu0 %1080, %v220
      %v1082 = vpop.permute.xlu0 %1081
      %1084 = vset.pattern.permute.xlu0 3
      %1085 = vperm.xlu0 %1084, %v221
      %v1086 = vpop.permute.xlu0 %1085
      %1088 = vset.pattern.permute.xlu0 3
      %1089 = vperm.xlu0 %1088, %v222
      %v1090 = vpop.permute.xlu0 %1089
      %1092 = vset.pattern.permute.xlu0 3
      %1093 = vperm.xlu0 %1092, %v223
      %v1094 = vpop.permute.xlu0 %1093
      %v1096 = vlaneseq
      %v1097 = vshrl.u32 %v1096, 7
      %v1098 = vsub.s32 3, %v1097
      %v1099 = vrot.slane %v200, %v1098
      %v1100 = vadd.f32 %v1034, %v1099
      %v1101 = vadd.f32 %v1038, %v1099
      %v1102 = vadd.f32 %v1042, %v1099
      %v1103 = vadd.f32 %v1046, %v1099
      %v1104 = vadd.f32 %v1050, %v1099
      %v1105 = vadd.f32 %v1054, %v1099
      %v1106 = vadd.f32 %v1058, %v1099
      %v1107 = vadd.f32 %v1062, %v1099
      %v1108 = vadd.f32 %v1066, %v1099
      %v1109 = vadd.f32 %v1070, %v1099
      %v1110 = vadd.f32 %v1074, %v1099
      %v1111 = vadd.f32 %v1078, %v1099
      %v1112 = vadd.f32 %v1082, %v1099
      %v1113 = vadd.f32 %v1086, %v1099
      %v1114 = vadd.f32 %v1090, %v1099
      %v1115 = vadd.f32 %v1094, %v1099
      %v1116 = vsub.f32 %v1100, %v736
      %v1117 = vsub.f32 %v1101, %v737
      %v1118 = vsub.f32 %v1102, %v738
      %v1119 = vsub.f32 %v1103, %v739
      %v1120 = vsub.f32 %v1104, %v740
      %v1121 = vsub.f32 %v1105, %v741
      %v1122 = vsub.f32 %v1106, %v742
      %v1123 = vsub.f32 %v1107, %v743
      %v1124 = vsub.f32 %v1108, %v744
      %v1125 = vsub.f32 %v1109, %v745
      %v1126 = vsub.f32 %v1110, %v746
      %v1127 = vsub.f32 %v1111, %v747
      %v1128 = vsub.f32 %v1112, %v748
      %v1129 = vsub.f32 %v1113, %v749
      %v1130 = vsub.f32 %v1114, %v750
      %v1131 = vsub.f32 %v1115, %v751
      %v1132 = vmax.f32 %v1116, 0.0
      %v1133 = vmax.f32 %v1117, 0.0
      %v1134 = vmax.f32 %v1118, 0.0
      %v1135 = vmax.f32 %v1119, 0.0
      %v1136 = vmax.f32 %v1120, 0.0
      %v1137 = vmax.f32 %v1121, 0.0
      %v1138 = vmax.f32 %v1122, 0.0
      %v1139 = vmax.f32 %v1123, 0.0
      %v1140 = vmax.f32 %v1124, 0.0
      %v1141 = vmax.f32 %v1125, 0.0
      %v1142 = vmax.f32 %v1126, 0.0
      %v1143 = vmax.f32 %v1127, 0.0
      %v1144 = vmax.f32 %v1128, 0.0
      %v1145 = vmax.f32 %v1129, 0.0
      %v1146 = vmax.f32 %v1130, 0.0
      %v1147 = vmax.f32 %v1131, 0.0
      %v1148 = vmul.f32 %v1016, %v1132
      %v1149 = vmul.f32 %v1017, %v1133
      %v1150 = vmul.f32 %v1018, %v1134
      %v1151 = vmul.f32 %v1019, %v1135
      %v1152 = vmul.f32 %v1020, %v1136
      %v1153 = vmul.f32 %v1021, %v1137
      %v1154 = vmul.f32 %v1022, %v1138
      %v1155 = vmul.f32 %v1023, %v1139
      %v1156 = vmul.f32 %v1024, %v1140
      %v1157 = vmul.f32 %v1025, %v1141
      %v1158 = vmul.f32 %v1026, %v1142
      %v1159 = vmul.f32 %v1027, %v1143
      %v1160 = vmul.f32 %v1028, %v1144
      %v1161 = vmul.f32 %v1029, %v1145
      %v1162 = vmul.f32 %v1030, %v1146
      %v1163 = vmul.f32 %v1031, %v1147
      %v1164 = vadd.f32 %v900, 1e-08
      %v1165 = vadd.f32 %v901, 1e-08
      %v1166 = vadd.f32 %v902, 1e-08
      %v1167 = vadd.f32 %v903, 1e-08
      %v1168 = vadd.f32 %v904, 1e-08
      %v1169 = vadd.f32 %v905, 1e-08
      %v1170 = vadd.f32 %v906, 1e-08
      %v1171 = vadd.f32 %v907, 1e-08
      %v1172 = vadd.f32 %v908, 1e-08
      %v1173 = vadd.f32 %v909, 1e-08
      %v1174 = vadd.f32 %v910, 1e-08
      %v1175 = vadd.f32 %v911, 1e-08
      %v1176 = vadd.f32 %v912, 1e-08
      %v1177 = vadd.f32 %v913, 1e-08
      %v1178 = vadd.f32 %v914, 1e-08
      %v1179 = vadd.f32 %v915, 1e-08
      %v1180 = vrcp.pop %v1164
      %v1181 = vrcp.pop %v1165
      %v1182 = vrcp.pop %v1166
      %v1183 = vrcp.pop %v1167
      %v1184 = vrcp.pop %v1168
      %v1185 = vrcp.pop %v1169
      %v1186 = vrcp.pop %v1170
      %v1187 = vrcp.pop %v1171
      %v1188 = vrcp.pop %v1172
      %v1189 = vrcp.pop %v1173
      %v1190 = vrcp.pop %v1174
      %v1191 = vrcp.pop %v1175
      %v1192 = vrcp.pop %v1176
      %v1193 = vrcp.pop %v1177
      %v1194 = vrcp.pop %v1178
      %v1195 = vrcp.pop %v1179
      %v1196 = vadd.f32 %v1148, 1e-08
      %v1197 = vadd.f32 %v1149, 1e-08
      %v1198 = vadd.f32 %v1150, 1e-08
      %v1199 = vadd.f32 %v1151, 1e-08
      %v1200 = vadd.f32 %v1152, 1e-08
      %v1201 = vadd.f32 %v1153, 1e-08
      %v1202 = vadd.f32 %v1154, 1e-08
      %v1203 = vadd.f32 %v1155, 1e-08
      %v1204 = vadd.f32 %v1156, 1e-08
      %v1205 = vadd.f32 %v1157, 1e-08
      %v1206 = vadd.f32 %v1158, 1e-08
      %v1207 = vadd.f32 %v1159, 1e-08
      %v1208 = vadd.f32 %v1160, 1e-08
      %v1209 = vadd.f32 %v1161, 1e-08
      %v1210 = vadd.f32 %v1162, 1e-08
      %v1211 = vadd.f32 %v1163, 1e-08
      %v1212 = vrcp.pop %v1196
      %v1213 = vrcp.pop %v1197
      %v1214 = vrcp.pop %v1198
      %v1215 = vrcp.pop %v1199
      %v1216 = vrcp.pop %v1200
      %v1217 = vrcp.pop %v1201
      %v1218 = vrcp.pop %v1202
      %v1219 = vrcp.pop %v1203
      %v1220 = vrcp.pop %v1204
      %v1221 = vrcp.pop %v1205
      %v1222 = vrcp.pop %v1206
      %v1223 = vrcp.pop %v1207
      %v1224 = vrcp.pop %v1208
      %v1225 = vrcp.pop %v1209
      %v1226 = vrcp.pop %v1210
      %v1227 = vrcp.pop %v1211
      %v1228 = vsub.f32 %v470, %v535
      %v1229 = vsub.f32 %v474, %v535
      %v1230 = vsub.f32 %v478, %v535
      %v1231 = vsub.f32 %v482, %v535
      %v1232 = vsub.f32 %v486, %v535
      %v1233 = vsub.f32 %v490, %v535
      %v1234 = vsub.f32 %v494, %v535
      %v1235 = vsub.f32 %v498, %v535
      %v1236 = vsub.f32 %v502, %v535
      %v1237 = vsub.f32 %v506, %v535
      %v1238 = vsub.f32 %v510, %v535
      %v1239 = vsub.f32 %v514, %v535
      %v1240 = vsub.f32 %v518, %v535
      %v1241 = vsub.f32 %v522, %v535
      %v1242 = vsub.f32 %v526, %v535
      %v1243 = vsub.f32 %v530, %v535
      %v1244 = vand.u32 2147483647, %v1228
      %v1245 = vand.u32 2147483647, %v1229
      %v1246 = vand.u32 2147483647, %v1230
      %v1247 = vand.u32 2147483647, %v1231
      %v1248 = vand.u32 2147483647, %v1232
      %v1249 = vand.u32 2147483647, %v1233
      %v1250 = vand.u32 2147483647, %v1234
      %v1251 = vand.u32 2147483647, %v1235
      %v1252 = vand.u32 2147483647, %v1236
      %v1253 = vand.u32 2147483647, %v1237
      %v1254 = vand.u32 2147483647, %v1238
      %v1255 = vand.u32 2147483647, %v1239
      %v1256 = vand.u32 2147483647, %v1240
      %v1257 = vand.u32 2147483647, %v1241
      %v1258 = vand.u32 2147483647, %v1242
      %v1259 = vand.u32 2147483647, %v1243
      %v1260 = vsub.f32 %v654, %v719
      %v1261 = vsub.f32 %v658, %v719
      %v1262 = vsub.f32 %v662, %v719
      %v1263 = vsub.f32 %v666, %v719
      %v1264 = vsub.f32 %v670, %v719
      %v1265 = vsub.f32 %v674, %v719
      %v1266 = vsub.f32 %v678, %v719
      %v1267 = vsub.f32 %v682, %v719
      %v1268 = vsub.f32 %v686, %v719
      %v1269 = vsub.f32 %v690, %v719
      %v1270 = vsub.f32 %v694, %v719
      %v1271 = vsub.f32 %v698, %v719
      %v1272 = vsub.f32 %v702, %v719
      %v1273 = vsub.f32 %v706, %v719
      %v1274 = vsub.f32 %v710, %v719
      %v1275 = vsub.f32 %v714, %v719
      %v1276 = vand.u32 2147483647, %v1260
      %v1277 = vand.u32 2147483647, %v1261
      %v1278 = vand.u32 2147483647, %v1262
      %v1279 = vand.u32 2147483647, %v1263
      %v1280 = vand.u32 2147483647, %v1264
      %v1281 = vand.u32 2147483647, %v1265
      %v1282 = vand.u32 2147483647, %v1266
      %v1283 = vand.u32 2147483647, %v1267
      %v1284 = vand.u32 2147483647, %v1268
      %v1285 = vand.u32 2147483647, %v1269
      %v1286 = vand.u32 2147483647, %v1270
      %v1287 = vand.u32 2147483647, %v1271
      %v1288 = vand.u32 2147483647, %v1272
      %v1289 = vand.u32 2147483647, %v1273
      %v1290 = vand.u32 2147483647, %v1274
      %v1291 = vand.u32 2147483647, %v1275
      %v1292 = vadd.f32 %v1244, %v1276
      %v1293 = vadd.f32 %v1245, %v1277
      %v1294 = vadd.f32 %v1246, %v1278
      %v1295 = vadd.f32 %v1247, %v1279
      %v1296 = vadd.f32 %v1248, %v1280
      %v1297 = vadd.f32 %v1249, %v1281
      %v1298 = vadd.f32 %v1250, %v1282
      %v1299 = vadd.f32 %v1251, %v1283
      %v1300 = vadd.f32 %v1252, %v1284
      %v1301 = vadd.f32 %v1253, %v1285
      %v1302 = vadd.f32 %v1254, %v1286
      %v1303 = vadd.f32 %v1255, %v1287
      %v1304 = vadd.f32 %v1256, %v1288
      %v1305 = vadd.f32 %v1257, %v1289
      %v1306 = vadd.f32 %v1258, %v1290
      %v1307 = vadd.f32 %v1259, %v1291
      %v1308 = vsub.f32 %v918, %v983
      %v1309 = vsub.f32 %v922, %v983
      %v1310 = vsub.f32 %v926, %v983
      %v1311 = vsub.f32 %v930, %v983
      %v1312 = vsub.f32 %v934, %v983
      %v1313 = vsub.f32 %v938, %v983
      %v1314 = vsub.f32 %v942, %v983
      %v1315 = vsub.f32 %v946, %v983
      %v1316 = vsub.f32 %v950, %v983
      %v1317 = vsub.f32 %v954, %v983
      %v1318 = vsub.f32 %v958, %v983
      %v1319 = vsub.f32 %v962, %v983
      %v1320 = vsub.f32 %v966, %v983
      %v1321 = vsub.f32 %v970, %v983
      %v1322 = vsub.f32 %v974, %v983
      %v1323 = vsub.f32 %v978, %v983
      %v1324 = vand.u32 2147483647, %v1308
      %v1325 = vand.u32 2147483647, %v1309
      %v1326 = vand.u32 2147483647, %v1310
      %v1327 = vand.u32 2147483647, %v1311
      %v1328 = vand.u32 2147483647, %v1312
      %v1329 = vand.u32 2147483647, %v1313
      %v1330 = vand.u32 2147483647, %v1314
      %v1331 = vand.u32 2147483647, %v1315
      %v1332 = vand.u32 2147483647, %v1316
      %v1333 = vand.u32 2147483647, %v1317
      %v1334 = vand.u32 2147483647, %v1318
      %v1335 = vand.u32 2147483647, %v1319
      %v1336 = vand.u32 2147483647, %v1320
      %v1337 = vand.u32 2147483647, %v1321
      %v1338 = vand.u32 2147483647, %v1322
      %v1339 = vand.u32 2147483647, %v1323
      %v1340 = vadd.f32 %v1292, %v1324
      %v1341 = vadd.f32 %v1293, %v1325
      %v1342 = vadd.f32 %v1294, %v1326
      %v1343 = vadd.f32 %v1295, %v1327
      %v1344 = vadd.f32 %v1296, %v1328
      %v1345 = vadd.f32 %v1297, %v1329
      %v1346 = vadd.f32 %v1298, %v1330
      %v1347 = vadd.f32 %v1299, %v1331
      %v1348 = vadd.f32 %v1300, %v1332
      %v1349 = vadd.f32 %v1301, %v1333
      %v1350 = vadd.f32 %v1302, %v1334
      %v1351 = vadd.f32 %v1303, %v1335
      %v1352 = vadd.f32 %v1304, %v1336
      %v1353 = vadd.f32 %v1305, %v1337
      %v1354 = vadd.f32 %v1306, %v1338
      %v1355 = vadd.f32 %v1307, %v1339
      %v1356 = vsub.f32 %v1034, %v1099
      %v1357 = vsub.f32 %v1038, %v1099
      %v1358 = vsub.f32 %v1042, %v1099
      %v1359 = vsub.f32 %v1046, %v1099
      %v1360 = vsub.f32 %v1050, %v1099
      %v1361 = vsub.f32 %v1054, %v1099
      %v1362 = vsub.f32 %v1058, %v1099
      %v1363 = vsub.f32 %v1062, %v1099
      %v1364 = vsub.f32 %v1066, %v1099
      %v1365 = vsub.f32 %v1070, %v1099
      %v1366 = vsub.f32 %v1074, %v1099
      %v1367 = vsub.f32 %v1078, %v1099
      %v1368 = vsub.f32 %v1082, %v1099
      %v1369 = vsub.f32 %v1086, %v1099
      %v1370 = vsub.f32 %v1090, %v1099
      %v1371 = vsub.f32 %v1094, %v1099
      %v1372 = vand.u32 2147483647, %v1356
      %v1373 = vand.u32 2147483647, %v1357
      %v1374 = vand.u32 2147483647, %v1358
      %v1375 = vand.u32 2147483647, %v1359
      %v1376 = vand.u32 2147483647, %v1360
      %v1377 = vand.u32 2147483647, %v1361
      %v1378 = vand.u32 2147483647, %v1362
      %v1379 = vand.u32 2147483647, %v1363
      %v1380 = vand.u32 2147483647, %v1364
      %v1381 = vand.u32 2147483647, %v1365
      %v1382 = vand.u32 2147483647, %v1366
      %v1383 = vand.u32 2147483647, %v1367
      %v1384 = vand.u32 2147483647, %v1368
      %v1385 = vand.u32 2147483647, %v1369
      %v1386 = vand.u32 2147483647, %v1370
      %v1387 = vand.u32 2147483647, %v1371
      %v1388 = vadd.f32 %v1340, %v1372
      %v1389 = vadd.f32 %v1341, %v1373
      %v1390 = vadd.f32 %v1342, %v1374
      %v1391 = vadd.f32 %v1343, %v1375
      %v1392 = vadd.f32 %v1344, %v1376
      %v1393 = vadd.f32 %v1345, %v1377
      %v1394 = vadd.f32 %v1346, %v1378
      %v1395 = vadd.f32 %v1347, %v1379
      %v1396 = vadd.f32 %v1348, %v1380
      %v1397 = vadd.f32 %v1349, %v1381
      %v1398 = vadd.f32 %v1350, %v1382
      %v1399 = vadd.f32 %v1351, %v1383
      %v1400 = vadd.f32 %v1352, %v1384
      %v1401 = vadd.f32 %v1353, %v1385
      %v1402 = vadd.f32 %v1354, %v1386
      %v1403 = vadd.f32 %v1355, %v1387
      %1404 = vset.pattern.permute.xlu0 4
      %1405 = vperm.xlu0 %1404, %v208
      %v1406 = vpop.permute.xlu0 %1405
      %1408 = vset.pattern.permute.xlu0 4
      %1409 = vperm.xlu0 %1408, %v209
      %v1410 = vpop.permute.xlu0 %1409
      %1412 = vset.pattern.permute.xlu0 4
      %1413 = vperm.xlu0 %1412, %v210
      %v1414 = vpop.permute.xlu0 %1413
      %1416 = vset.pattern.permute.xlu0 4
      %1417 = vperm.xlu0 %1416, %v211
      %v1418 = vpop.permute.xlu0 %1417
      %1420 = vset.pattern.permute.xlu0 4
      %1421 = vperm.xlu0 %1420, %v212
      %v1422 = vpop.permute.xlu0 %1421
      %1424 = vset.pattern.permute.xlu0 4
      %1425 = vperm.xlu0 %1424, %v213
      %v1426 = vpop.permute.xlu0 %1425
      %1428 = vset.pattern.permute.xlu0 4
      %1429 = vperm.xlu0 %1428, %v214
      %v1430 = vpop.permute.xlu0 %1429
      %1432 = vset.pattern.permute.xlu0 4
      %1433 = vperm.xlu0 %1432, %v215
      %v1434 = vpop.permute.xlu0 %1433
      %1436 = vset.pattern.permute.xlu0 4
      %1437 = vperm.xlu0 %1436, %v216
      %v1438 = vpop.permute.xlu0 %1437
      %1440 = vset.pattern.permute.xlu0 4
      %1441 = vperm.xlu0 %1440, %v217
      %v1442 = vpop.permute.xlu0 %1441
      %1444 = vset.pattern.permute.xlu0 4
      %1445 = vperm.xlu0 %1444, %v218
      %v1446 = vpop.permute.xlu0 %1445
      %1448 = vset.pattern.permute.xlu0 4
      %1449 = vperm.xlu0 %1448, %v219
      %v1450 = vpop.permute.xlu0 %1449
      %1452 = vset.pattern.permute.xlu0 4
      %1453 = vperm.xlu0 %1452, %v220
      %v1454 = vpop.permute.xlu0 %1453
      %1456 = vset.pattern.permute.xlu0 4
      %1457 = vperm.xlu0 %1456, %v221
      %v1458 = vpop.permute.xlu0 %1457
      %1460 = vset.pattern.permute.xlu0 4
      %1461 = vperm.xlu0 %1460, %v222
      %v1462 = vpop.permute.xlu0 %1461
      %1464 = vset.pattern.permute.xlu0 4
      %1465 = vperm.xlu0 %1464, %v223
      %v1466 = vpop.permute.xlu0 %1465
      %v1468 = vsub.f32 %v1388, %v1406
      %v1469 = vsub.f32 %v1389, %v1410
      %v1470 = vsub.f32 %v1390, %v1414
      %v1471 = vsub.f32 %v1391, %v1418
      %v1472 = vsub.f32 %v1392, %v1422
      %v1473 = vsub.f32 %v1393, %v1426
      %v1474 = vsub.f32 %v1394, %v1430
      %v1475 = vsub.f32 %v1395, %v1434
      %v1476 = vsub.f32 %v1396, %v1438
      %v1477 = vsub.f32 %v1397, %v1442
      %v1478 = vsub.f32 %v1398, %v1446
      %v1479 = vsub.f32 %v1399, %v1450
      %v1480 = vsub.f32 %v1400, %v1454
      %v1481 = vsub.f32 %v1401, %v1458
      %v1482 = vsub.f32 %v1402, %v1462
      %v1483 = vsub.f32 %v1403, %v1466
      %v1484 = vsub.f32 %v1148, %v900
      %v1485 = vsub.f32 %v1149, %v901
      %v1486 = vsub.f32 %v1150, %v902
      %v1487 = vsub.f32 %v1151, %v903
      %v1488 = vsub.f32 %v1152, %v904
      %v1489 = vsub.f32 %v1153, %v905
      %v1490 = vsub.f32 %v1154, %v906
      %v1491 = vsub.f32 %v1155, %v907
      %v1492 = vsub.f32 %v1156, %v908
      %v1493 = vsub.f32 %v1157, %v909
      %v1494 = vsub.f32 %v1158, %v910
      %v1495 = vsub.f32 %v1159, %v911
      %v1496 = vsub.f32 %v1160, %v912
      %v1497 = vsub.f32 %v1161, %v913
      %v1498 = vsub.f32 %v1162, %v914
      %v1499 = vsub.f32 %v1163, %v915
      %v1500 = vmul.f32 %v1484, %v1212
      %v1501 = vmul.f32 %v1485, %v1213
      %v1502 = vmul.f32 %v1486, %v1214
      %v1503 = vmul.f32 %v1487, %v1215
      %v1504 = vmul.f32 %v1488, %v1216
      %v1505 = vmul.f32 %v1489, %v1217
      %v1506 = vmul.f32 %v1490, %v1218
      %v1507 = vmul.f32 %v1491, %v1219
      %v1508 = vmul.f32 %v1492, %v1220
      %v1509 = vmul.f32 %v1493, %v1221
      %v1510 = vmul.f32 %v1494, %v1222
      %v1511 = vmul.f32 %v1495, %v1223
      %v1512 = vmul.f32 %v1496, %v1224
      %v1513 = vmul.f32 %v1497, %v1225
      %v1514 = vmul.f32 %v1498, %v1226
      %v1515 = vmul.f32 %v1499, %v1227
      %v1516 = vadd.f32 %v1468, %v1500
      %v1517 = vadd.f32 %v1469, %v1501
      %v1518 = vadd.f32 %v1470, %v1502
      %v1519 = vadd.f32 %v1471, %v1503
      %v1520 = vadd.f32 %v1472, %v1504
      %v1521 = vadd.f32 %v1473, %v1505
      %v1522 = vadd.f32 %v1474, %v1506
      %v1523 = vadd.f32 %v1475, %v1507
      %v1524 = vadd.f32 %v1476, %v1508
      %v1525 = vadd.f32 %v1477, %v1509
      %v1526 = vadd.f32 %v1478, %v1510
      %v1527 = vadd.f32 %v1479, %v1511
      %v1528 = vadd.f32 %v1480, %v1512
      %v1529 = vadd.f32 %v1481, %v1513
      %v1530 = vadd.f32 %v1482, %v1514
      %v1531 = vadd.f32 %v1483, %v1515
      %v1532 = vmul.f32 %v784, %v1180
      %v1533 = vmul.f32 %v785, %v1181
      %v1534 = vmul.f32 %v786, %v1182
      %v1535 = vmul.f32 %v787, %v1183
      %v1536 = vmul.f32 %v788, %v1184
      %v1537 = vmul.f32 %v789, %v1185
      %v1538 = vmul.f32 %v790, %v1186
      %v1539 = vmul.f32 %v791, %v1187
      %v1540 = vmul.f32 %v792, %v1188
      %v1541 = vmul.f32 %v793, %v1189
      %v1542 = vmul.f32 %v794, %v1190
      %v1543 = vmul.f32 %v795, %v1191
      %v1544 = vmul.f32 %v796, %v1192
      %v1545 = vmul.f32 %v797, %v1193
      %v1546 = vmul.f32 %v798, %v1194
      %v1547 = vmul.f32 %v799, %v1195
      %v1548 = vsub.f32 %v1516, %v1532
      %v1549 = vsub.f32 %v1517, %v1533
      %v1550 = vsub.f32 %v1518, %v1534
      %v1551 = vsub.f32 %v1519, %v1535
      %v1552 = vsub.f32 %v1520, %v1536
      %v1553 = vsub.f32 %v1521, %v1537
      %v1554 = vsub.f32 %v1522, %v1538
      %v1555 = vsub.f32 %v1523, %v1539
      %v1556 = vsub.f32 %v1524, %v1540
      %v1557 = vsub.f32 %v1525, %v1541
      %v1558 = vsub.f32 %v1526, %v1542
      %v1559 = vsub.f32 %v1527, %v1543
      %v1560 = vsub.f32 %v1528, %v1544
      %v1561 = vsub.f32 %v1529, %v1545
      %v1562 = vsub.f32 %v1530, %v1546
      %v1563 = vsub.f32 %v1531, %v1547
      %v1564 = vpack.c.bf16 %v1549, %v1548
      %v1565 = vpack.c.bf16 %v1551, %v1550
      %v1566 = vpack.c.bf16 %v1553, %v1552
      %v1567 = vpack.c.bf16 %v1555, %v1554
      %v1568 = vpack.c.bf16 %v1557, %v1556
      %v1569 = vpack.c.bf16 %v1559, %v1558
      %v1570 = vpack.c.bf16 %v1561, %v1560
      %v1571 = vpack.c.bf16 %v1563, %v1562
      %v1580 = vunpack.c.l.b16 %v1564
      %v1581 = vunpack.c.h.b16 %v1564
      %v1582 = vunpack.c.l.b16 %v1565
      %v1583 = vunpack.c.h.b16 %v1565
      %v1584 = vunpack.c.l.b16 %v1566
      %v1585 = vunpack.c.h.b16 %v1566
      %v1586 = vunpack.c.l.b16 %v1567
      %v1587 = vunpack.c.h.b16 %v1567
      %v1588 = vunpack.c.l.b16 %v1568
      %v1589 = vunpack.c.h.b16 %v1568
      %v1590 = vunpack.c.l.b16 %v1569
      %v1591 = vunpack.c.h.b16 %v1569
      %v1592 = vunpack.c.l.b16 %v1570
      %v1593 = vunpack.c.h.b16 %v1570
      %v1594 = vunpack.c.l.b16 %v1571
      %v1595 = vunpack.c.h.b16 %v1571
      %v1596 = vpack.c.b16 %v1580, %v1580
      %v1597 = vpack.c.b16 %v1581, %v1581
      %v1598 = vpack.c.b16 %v1582, %v1582
      %v1599 = vpack.c.b16 %v1583, %v1583
      %v1600 = vpack.c.b16 %v1584, %v1584
      %v1601 = vpack.c.b16 %v1585, %v1585
      %v1602 = vpack.c.b16 %v1586, %v1586
      %v1603 = vpack.c.b16 %v1587, %v1587
      %v1604 = vpack.c.b16 %v1588, %v1588
      %v1605 = vpack.c.b16 %v1589, %v1589
      %v1606 = vpack.c.b16 %v1590, %v1590
      %v1607 = vpack.c.b16 %v1591, %v1591
      %v1608 = vpack.c.b16 %v1592, %v1592
      %v1609 = vpack.c.b16 %v1593, %v1593
      %v1610 = vpack.c.b16 %v1594, %v1594
      %v1611 = vpack.c.b16 %v1595, %v1595
      %vm1628 = vcmask 60416
      %1629 = vst.msk [vmem:[%s198] sm:$0xf] %vm1628, %v1596
      %1630 = vst.msk [vmem:[%s198 + $0x4] sm:$0xf] %vm1628, %v1597
      %1631 = vst.msk [vmem:[%s198 + $0x8] sm:$0xf] %vm1628, %v1598
      %1632 = vst.msk [vmem:[%s198 + $0xc] sm:$0xf] %vm1628, %v1599
      %1633 = vst.msk [vmem:[%s198 + $0x10] sm:$0xf] %vm1628, %v1600
      %1634 = vst.msk [vmem:[%s198 + $0x14] sm:$0xf] %vm1628, %v1601
      %1635 = vst.msk [vmem:[%s198 + $0x18] sm:$0xf] %vm1628, %v1602
      %1636 = vst.msk [vmem:[%s198 + $0x1c] sm:$0xf] %vm1628, %v1603
      %1637 = vst.msk [vmem:[%s198 + $0x20] sm:$0xf] %vm1628, %v1604
      %1638 = vst.msk [vmem:[%s198 + $0x24] sm:$0xf] %vm1628, %v1605
      %1639 = vst.msk [vmem:[%s198 + $0x28] sm:$0xf] %vm1628, %v1606
      %1640 = vst.msk [vmem:[%s198 + $0x2c] sm:$0xf] %vm1628, %v1607
      %1641 = vst.msk [vmem:[%s198 + $0x30] sm:$0xf] %vm1628, %v1608
      %1642 = vst.msk [vmem:[%s198 + $0x34] sm:$0xf] %vm1628, %v1609
      %1643 = vst.msk [vmem:[%s198 + $0x38] sm:$0xf] %vm1628, %v1610
      %1644 = vst.msk [vmem:[%s198 + $0x3c] sm:$0xf] %vm1628, %v1611
      %s1645 = smul.u32 16, %s18
      %p1646 = scmp.lt.s32.totalorder %s17, 1
      %s1647 = scalar_select %p1646, %s17, 1
      %p1648 = scmp.lt.s32.totalorder %s1645, 15
      %s1649 = scalar_select %p1648, %s1645, 15
      %s1650 = smul.addr %s1647, 16
      %s1651 = sadd.s32 %s1649, %s1650
      %s1652 = smul.addr %s1651, 4
      %s1653 = scalar_lea.vmem %s2, %s1652
      // Predicated region
      $region29: #{compute_cost_matrices.1} parent=27 // pred_check
        %p1654 = pneg %p99
      $region30: #{compute_cost_matrices.1} parent=27 // pred_check_branch
        %1656 = sbr.rel (%p1654) target = $region32
      $region31: #{compute_cost_matrices.1} parent=27 // pred_region
        %s1657 = smul.u32 16, %s18
      $region32: #{compute_cost_matrices.1} parent=27 // pred_fallthru
        _
    $region28: #{compute_cost_matrices.1} parent=5 // pred_fallthru
      _
    %p1658 = scmp.le.s32.totalorder 2, %s8
    // Predicated region
    $region33: #{compute_cost_matrices.1} parent=5 // pred_check
      %p1659 = pneg %p1658
    $region34: #{compute_cost_matrices.1} parent=5 // pred_check_branch
      %1661 = sbr.rel (%p1659) target = $region36
    $region35: #{compute_cost_matrices.1} parent=5 // pred_region
      %s1662 = ssub.s32 %s8, 2
      // Predicated region
      $region37: #{compute_cost_matrices.1} parent=35 // pred_check
        %p1663 = pneg %p105
      $region38: #{compute_cost_matrices.1} parent=35 // pred_check_branch
        %1665 = sbr.rel (%p1663) target = $region40
      $region39: #{compute_cost_matrices.1} parent=35 // pred_region
        %s1666 = smul.u32 16, %s20
        %p1667 = scmp.lt.s32.totalorder %s19, 1
        %s1668 = scalar_select %p1667, %s19, 1
        %p1669 = scmp.lt.s32.totalorder %s1666, 15
        %s1670 = scalar_select %p1669, %s1666, 15
        %s1671 = smul.addr %s1668, 16
        %s1672 = sadd.s32 %s1670, %s1671
        %s1673 = smul.addr %s1672, 4
        %s1674 = scalar_lea.vmem %s2, %s1673
      $region40: #{compute_cost_matrices.1} parent=35 // pred_fallthru
        _
    $region36: #{compute_cost_matrices.1} parent=5 // pred_fallthru
      _
  $region6: #{compute_cost_matrices.1} parent=0 // loop_footer
    %s12 = sadd.s32 1, %s8
  $region7: #{compute_cost_matrices.1} parent=0 // loop_footer_branch
    %7 = sbr.rel target = $region3
  $region8: #{compute_cost_matrices.1} parent=0 // loop_exit
    _

</llo_original>
